<compile_context>
chip_gen: v6e
topology: v6e:2x2x1
jax: 0.10.0
libtpu: 0.0.40
codegen_flags: <defaults>
</compile_context>

<pallas_src>
import jax
import jax.numpy as jnp
from jax.experimental import pallas as pl
from jax.experimental.pallas import tpu as pltpu

HIDDEN = 256
A_PAD = 128          # lane-dense padded action width (>= n_actions, multiple of 128)
NEG_BIG = -1e30      # logit bias for padded action lanes -> exp underflows to exactly 0


def _recurrent_actor_kernel(len_ref, x_ref,
                            w1_ref, b1_ref,
                            wl_ref, bl_ref,
                            w2_ref, b2_ref,
                            wo_ref, bo_ref,
                            h0_ref, c0_ref,
                            probs_ref, h_out_ref, c_out_ref):
    t = pl.program_id(0)
    H = h_out_ref.shape[-1]
    bf = jnp.bfloat16

    # Initialize the carried hidden state (lives in the resident output refs).
    @pl.when(t == 0)
    def _():
        h_out_ref[...] = h0_ref[...]
        c_out_ref[...] = c0_ref[...]

    h_prev = h_out_ref[...]                                    # [B, H] f32
    c_prev = c_out_ref[...]                                    # [B, H] f32

    # fc1 + relu
    x = x_ref[0]                                               # [B, obs]
    h1 = jnp.maximum(
        jnp.dot(x.astype(bf), w1_ref[...], preferred_element_type=jnp.float32)
        + b1_ref[...], 0.0)                                    # [B, H]

    # Fused LSTM gate matmul: [h1 | h_prev] @ [Wih^T ; Whh^T] + (bih + bhh)
    hc = jnp.concatenate([h1, h_prev], axis=-1).astype(bf)     # [B, 2H]
    gates = jnp.dot(hc, wl_ref[...],
                    preferred_element_type=jnp.float32) + bl_ref[...]   # [B, 4H]
    i_g = jax.nn.sigmoid(gates[:, 0:H])
    f_g = jax.nn.sigmoid(gates[:, H:2 * H])
    g_g = jnp.tanh(gates[:, 2 * H:3 * H])
    o_g = jax.nn.sigmoid(gates[:, 3 * H:4 * H])
    c_new = f_g * c_prev + i_g * g_g
    h_new = o_g * jnp.tanh(c_new)

    # pack_padded_sequence semantics: only advance the state while t < seq_len.
    valid = t < len_ref[...]                                   # [B, 1] bool
    h_t = jnp.where(valid, h_new, h_prev)
    c_t = jnp.where(valid, c_new, c_prev)
    h_out_ref[...] = h_t                                       # carry + final out_hidden
    c_out_ref[...] = c_t

    # pad_packed_sequence pads with zeros for t >= seq_len.
    y = jnp.where(valid, h_t, 0.0)                             # [B, H]

    # fc2 + relu, fc_out (padded to 128 lanes), softmax.
    h2 = jnp.maximum(
        jnp.dot(y.astype(bf), w2_ref[...], preferred_element_type=jnp.float32)
        + b2_ref[...], 0.0)
    logits = jnp.dot(h2.astype(bf), wo_ref[...],
                     preferred_element_type=jnp.float32) + bo_ref[...]   # [B, A_PAD]
    z = logits - jnp.max(logits, axis=-1, keepdims=True)
    e = jnp.exp(z)                                             # padded lanes -> exactly 0
    probs = e / jnp.sum(e, axis=-1, keepdims=True)
    probs_ref[0] = probs


def recurrent_discrete_actor_forward(states, seq_lengths, params, in_hidden=None):
    """Run RecurrentDiscreteActor.forward as one Pallas kernel.

    states:      [T, B, obs_dim] float32 (time-major, like default PyTorch LSTM)
    seq_lengths: [B] int
    params:      PyTorch-convention weights (see make_params)
    in_hidden:   optional (h0, c0), each broadcastable to [B, 256]
    returns:     (action_probs [T, B, n_actions], (h_n [1,B,256], c_n [1,B,256]))
    """
    T, B, obs_dim = states.shape
    H = HIDDEN
    n_act = params["fc_out_w"].shape[0]
    assert n_act <= A_PAD
    bf = jnp.bfloat16
    f32 = jnp.float32

    # ---- pack / pad weights (one-time wrapper cost) ----
    w1 = params["fc1_w"].T.astype(bf)                                   # [obs, H]
    b1 = params["fc1_b"].reshape(1, H).astype(f32)
    w_lstm = jnp.concatenate(
        [params["lstm_w_ih"].T, params["lstm_w_hh"].T], axis=0).astype(bf)  # [2H, 4H]
    b_lstm = (params["lstm_b_ih"] + params["lstm_b_hh"]).reshape(1, 4 * H).astype(f32)
    w2 = params["fc2_w"].T.astype(bf)                                   # [H, H]
    b2 = params["fc2_b"].reshape(1, H).astype(f32)
    wo = jnp.zeros((H, A_PAD), bf).at[:, :n_act].set(params["fc_out_w"].T.astype(bf))
    bo = jnp.full((1, A_PAD), NEG_BIG, f32).at[0, :n_act].set(
        params["fc_out_b"].astype(f32))

    if in_hidden is None:
        h0 = jnp.zeros((B, H), f32)
        c0 = jnp.zeros((B, H), f32)
    else:
        h0 = jnp.asarray(in_hidden[0], f32).reshape(B, H)
        c0 = jnp.asarray(in_hidden[1], f32).reshape(B, H)

    lens = jnp.asarray(seq_lengths, jnp.int32).reshape(B, 1)

    const2 = lambda shape: pl.BlockSpec(shape, lambda t: (0, 0))

    in_specs = [
        const2((B, 1)),                                       # seq lengths
        pl.BlockSpec((1, B, obs_dim), lambda t: (t, 0, 0)),   # states_t streams over time
        const2((obs_dim, H)), const2((1, H)),                 # fc1
        const2((2 * H, 4 * H)), const2((1, 4 * H)),           # fused LSTM
        const2((H, H)), const2((1, H)),                       # fc2
        const2((H, A_PAD)), const2((1, A_PAD)),               # fc_out (lane-dense)
        const2((B, H)), const2((B, H)),                       # h0, c0
    ]
    out_shapes = (
        jax.ShapeDtypeStruct((T, B, A_PAD), f32),             # padded action probs
        jax.ShapeDtypeStruct((B, H), f32),                    # h_n
        jax.ShapeDtypeStruct((B, H), f32),                    # c_n
    )
    out_specs = (
        pl.BlockSpec((1, B, A_PAD), lambda t: (t, 0, 0)),
        const2((B, H)),
        const2((B, H)),
    )

    probs_pad, h_n, c_n = pl.pallas_call(
        _recurrent_actor_kernel,
        out_shape=out_shapes,
        grid=(T,),
        in_specs=in_specs,
        out_specs=out_specs,
        compiler_params=pltpu.CompilerParams(
            dimension_semantics=("arbitrary",)),              # recurrence => sequential
    )(lens, states, w1, b1, w_lstm, b_lstm, w2, b2, wo, bo, h0, c0)

    action_probs = probs_pad[:, :, :n_act]
    return action_probs, (h_n[None], c_n[None])


def make_params(key, obs_dim, n_actions, hidden=HIDDEN):
    ks = jax.random.split(key, 10)

    def unif(k, shape, fan_in):
        s = 1.0 / jnp.sqrt(fan_in)
        return jax.random.uniform(k, shape, jnp.float32, -s, s)

    return {
        "fc1_w": unif(ks[0], (hidden, obs_dim), obs_dim),
        "fc1_b": unif(ks[1], (hidden,), obs_dim),
        "lstm_w_ih": unif(ks[2], (4 * hidden, hidden), hidden),
        "lstm_w_hh": unif(ks[3], (4 * hidden, hidden), hidden),
        "lstm_b_ih": unif(ks[4], (4 * hidden,), hidden),
        "lstm_b_hh": unif(ks[5], (4 * hidden,), hidden),
        "fc2_w": unif(ks[6], (hidden, hidden), hidden),
        "fc2_b": unif(ks[7], (hidden,), hidden),
        "fc_out_w": unif(ks[8], (n_actions, hidden), hidden),
        "fc_out_b": unif(ks[9], (n_actions,), hidden),
    }


def reference_forward(states, seq_lengths, params, in_hidden=None):
    """Pure-JAX reference mirroring the kernel's numerics (bf16 weights, f32 acc)."""
    T, B, _ = states.shape
    H = HIDDEN
    bf = jnp.bfloat16
    w1 = params["fc1_w"].T.astype(bf)
    b1 = params["fc1_b"]
    w_lstm = jnp.concatenate(
        [params["lstm_w_ih"].T, params["lstm_w_hh"].T], axis=0).astype(bf)
    b_lstm = params["lstm_b_ih"] + params["lstm_b_hh"]
    w2 = params["fc2_w"].T.astype(bf)
    b2 = params["fc2_b"]
    wo = params["fc_out_w"].T.astype(bf)
    bo = params["fc_out_b"]

    def dot(a, w):
        return jnp.dot(a.astype(bf), w, preferred_element_type=jnp.float32)

    if in_hidden is None:
        h = jnp.zeros((B, H), jnp.float32)
        c = jnp.zeros((B, H), jnp.float32)
    else:
        h, c = (jnp.asarray(v, jnp.float32).reshape(B, H) for v in in_hidden)

    lens = jnp.asarray(seq_lengths, jnp.int32).reshape(B, 1)
    probs_all = []
    for t in range(T):
        h1 = jnp.maximum(dot(states[t], w1) + b1, 0.0)
        gates = dot(jnp.concatenate([h1, h], axis=-1), w_lstm) + b_lstm
        i_g = jax.nn.sigmoid(gates[:, 0:H])
        f_g = jax.nn.sigmoid(gates[:, H:2 * H])
        g_g = jnp.tanh(gates[:, 2 * H:3 * H])
        o_g = jax.nn.sigmoid(gates[:, 3 * H:4 * H])
        c_new = f_g * c + i_g * g_g
        h_new = o_g * jnp.tanh(c_new)
        valid = t < lens
        h = jnp.where(valid, h_new, h)
        c = jnp.where(valid, c_new, c)
        y = jnp.where(valid, h, 0.0)
        h2 = jnp.maximum(dot(y, w2) + b2, 0.0)
        logits = dot(h2, wo) + bo
        probs_all.append(jax.nn.softmax(logits, axis=-1))
    return jnp.stack(probs_all, axis=0), (h, c)


if __name__ == "__main__":
    key = jax.random.PRNGKey(0)
    k_params, k_states = jax.random.split(key)

    T, B = 8, 4          # sequence length, batch
    obs_dim = 16         # env.observation_space.shape = (16,)
    n_actions = 6        # env.action_space.n = 6

    params = make_params(k_params, obs_dim, n_actions)
    states = jax.random.normal(k_states, (T, B, obs_dim), jnp.float32)
    seq_lengths = jnp.array([8, 5, 3, 1], jnp.int32)   # padded / variable-length batch

    action_probs, (h_n, c_n) = recurrent_discrete_actor_forward(
        states, seq_lengths, params, in_hidden=None)
    jax.block_until_ready((action_probs, h_n, c_n))

    ref_probs, (ref_h, ref_c) = reference_forward(states, seq_lengths, params)

    assert action_probs.shape == (T, B, n_actions)
    assert h_n.shape == (1, B, HIDDEN) and c_n.shape == (1, B, HIDDEN)
    assert jnp.allclose(action_probs, ref_probs, atol=2e-3, rtol=2e-3)
    assert jnp.allclose(h_n[0], ref_h, atol=2e-3, rtol=2e-3)
    assert jnp.allclose(c_n[0], ref_c, atol=2e-3, rtol=2e-3)
    assert jnp.allclose(action_probs.sum(-1), 1.0, atol=1e-3)

    # TODO(synk): get_actions() Categorical sampling / log-prob stays in host-side
    # JAX (jax.random.categorical + jnp.log); only forward() is the kernel hot path.
    print("KERNEL_OK")
</pallas_src>

<mosaic_0001>
module attributes {stable_mosaic.version = 11 : i64} {
  func.func @_recurrent_actor_kernel(%arg0: i32, %arg1: memref<4x1xi32, #tpu.memory_space<vmem>>, %arg2: memref<1x4x16xf32, #tpu.memory_space<vmem>>, %arg3: memref<16x256xbf16, #tpu.memory_space<vmem>>, %arg4: memref<1x256xf32, #tpu.memory_space<vmem>>, %arg5: memref<512x1024xbf16, #tpu.memory_space<vmem>>, %arg6: memref<1x1024xf32, #tpu.memory_space<vmem>>, %arg7: memref<256x256xbf16, #tpu.memory_space<vmem>>, %arg8: memref<1x256xf32, #tpu.memory_space<vmem>>, %arg9: memref<256x128xbf16, #tpu.memory_space<vmem>>, %arg10: memref<1x128xf32, #tpu.memory_space<vmem>>, %arg11: memref<4x256xf32, #tpu.memory_space<vmem>>, %arg12: memref<4x256xf32, #tpu.memory_space<vmem>>, %arg13: memref<1x4x128xf32, #tpu.memory_space<vmem>>, %arg14: memref<4x256xf32, #tpu.memory_space<vmem>>, %arg15: memref<4x256xf32, #tpu.memory_space<vmem>>) attributes {dimension_semantics = [#tpu.dimension_semantics<arbitrary>], iteration_bounds = array<i64: 8>, scalar_prefetch = 0 : i64, scratch_operands = 0 : i64, tpu.core_type = #tpu.core_type<tc>, window_params = [{pipeline_mode = #tpu.pipeline_mode<synchronous>, transform_indices = @transform_0, window_bounds = array<i64: 4, 1>}, {transform_indices = @transform_1, window_bounds = array<i64: 1, 4, 16>}, {pipeline_mode = #tpu.pipeline_mode<synchronous>, transform_indices = @transform_2, window_bounds = array<i64: 16, 256>}, {pipeline_mode = #tpu.pipeline_mode<synchronous>, transform_indices = @transform_3, window_bounds = array<i64: 1, 256>}, {pipeline_mode = #tpu.pipeline_mode<synchronous>, transform_indices = @transform_4, window_bounds = array<i64: 512, 1024>}, {pipeline_mode = #tpu.pipeline_mode<synchronous>, transform_indices = @transform_5, window_bounds = array<i64: 1, 1024>}, {pipeline_mode = #tpu.pipeline_mode<synchronous>, transform_indices = @transform_6, window_bounds = array<i64: 256, 256>}, {pipeline_mode = #tpu.pipeline_mode<synchronous>, transform_indices = @transform_7, window_bounds = array<i64: 1, 256>}, {pipeline_mode = #tpu.pipeline_mode<synchronous>, transform_indices = @transform_8, window_bounds = array<i64: 256, 128>}, {pipeline_mode = #tpu.pipeline_mode<synchronous>, transform_indices = @transform_9, window_bounds = array<i64: 1, 128>}, {pipeline_mode = #tpu.pipeline_mode<synchronous>, transform_indices = @transform_10, window_bounds = array<i64: 4, 256>}, {pipeline_mode = #tpu.pipeline_mode<synchronous>, transform_indices = @transform_11, window_bounds = array<i64: 4, 256>}, {transform_indices = @transform_12, window_bounds = array<i64: 1, 4, 128>}, {pipeline_mode = #tpu.pipeline_mode<synchronous>, transform_indices = @transform_13, window_bounds = array<i64: 4, 256>}, {pipeline_mode = #tpu.pipeline_mode<synchronous>, transform_indices = @transform_14, window_bounds = array<i64: 4, 256>}]} {
    %c0_i32 = arith.constant 0 : i32
    %0 = arith.cmpi eq, %arg0, %c0_i32 : i32
    %1 = arith.extui %0 : i1 to i32
    %c0_i32_0 = arith.constant 0 : i32
    %2 = arith.cmpi ne, %1, %c0_i32_0 : i32
    scf.if %2 {
      %c0_43 = arith.constant 0 : index
      %c0_44 = arith.constant 0 : index
      %88 = vector.load %arg11[%c0_43, %c0_44] : memref<4x256xf32, #tpu.memory_space<vmem>>, vector<4x256xf32>
      %c0_45 = arith.constant 0 : index
      %c0_46 = arith.constant 0 : index
      %89 = vector.load %arg14[%c0_45, %c0_46] : memref<4x256xf32, #tpu.memory_space<vmem>>, vector<4x256xf32>
      tpu.vector_store %arg14[%c0_45, %c0_46], %88 {strides = array<i32>} : memref<4x256xf32, #tpu.memory_space<vmem>>, vector<4x256xf32>,
      %c0_47 = arith.constant 0 : index
      %c0_48 = arith.constant 0 : index
      %90 = vector.load %arg12[%c0_47, %c0_48] : memref<4x256xf32, #tpu.memory_space<vmem>>, vector<4x256xf32>
      %c0_49 = arith.constant 0 : index
      %c0_50 = arith.constant 0 : index
      %91 = vector.load %arg15[%c0_49, %c0_50] : memref<4x256xf32, #tpu.memory_space<vmem>>, vector<4x256xf32>
      tpu.vector_store %arg15[%c0_49, %c0_50], %90 {strides = array<i32>} : memref<4x256xf32, #tpu.memory_space<vmem>>, vector<4x256xf32>,
    } else {
    }
    %c0 = arith.constant 0 : index
    %c0_1 = arith.constant 0 : index
    %3 = vector.load %arg14[%c0, %c0_1] : memref<4x256xf32, #tpu.memory_space<vmem>>, vector<4x256xf32>
    %c0_2 = arith.constant 0 : index
    %c0_3 = arith.constant 0 : index
    %4 = vector.load %arg15[%c0_2, %c0_3] : memref<4x256xf32, #tpu.memory_space<vmem>>, vector<4x256xf32>
    %c0_4 = arith.constant 0 : index
    %c0_5 = arith.constant 0 : index
    %c0_6 = arith.constant 0 : index
    %5 = vector.load %arg2[%c0_4, %c0_5, %c0_6] : memref<1x4x16xf32, #tpu.memory_space<vmem>>, vector<1x4x16xf32>
    %6 = vector.shape_cast %5 : vector<1x4x16xf32> to vector<4x16xf32>
    %7 = arith.truncf %6 : vector<4x16xf32> to vector<4x16xbf16>
    %c0_7 = arith.constant 0 : index
    %c0_8 = arith.constant 0 : index
    %8 = vector.load %arg3[%c0_7, %c0_8] : memref<16x256xbf16, #tpu.memory_space<vmem>>, vector<16x256xbf16>
    %cst = arith.constant dense<0.000000e+00> : vector<4x256xf32>
    %9 = tpu.matmul %7, %8, %cst {dimension_numbers = #tpu.dot_dimension_numbers<[1], [0], [0], [1], [0, 0, 1, 1], [], []>} : vector<4x16xbf16>, vector<16x256xbf16>, vector<4x256xf32> -> vector<4x256xf32>
    %c0_9 = arith.constant 0 : index
    %c0_10 = arith.constant 0 : index
    %10 = vector.load %arg4[%c0_9, %c0_10] : memref<1x256xf32, #tpu.memory_space<vmem>>, vector<1x256xf32>
    %11 = vector.broadcast %10 : vector<1x256xf32> to vector<4x256xf32>
    %12 = arith.addf %9, %11 : vector<4x256xf32>
    %cst_11 = arith.constant 0.000000e+00 : f32
    %13 = vector.broadcast %cst_11 : f32 to vector<4x256xf32>
    %14 = arith.maximumf %12, %13 : vector<4x256xf32>
    %15 = tpu.concatenate %14, %3 in 1 : vector<4x256xf32>, vector<4x256xf32> -> vector<4x512xf32>
    %16 = arith.truncf %15 : vector<4x512xf32> to vector<4x512xbf16>
    %c0_12 = arith.constant 0 : index
    %c0_13 = arith.constant 0 : index
    %17 = vector.load %arg5[%c0_12, %c0_13] : memref<512x1024xbf16, #tpu.memory_space<vmem>>, vector<512x1024xbf16>
    %cst_14 = arith.constant dense<0.000000e+00> : vector<4x1024xf32>
    %18 = tpu.matmul %16, %17, %cst_14 {dimension_numbers = #tpu.dot_dimension_numbers<[1], [0], [0], [1], [0, 0, 1, 1], [], []>} : vector<4x512xbf16>, vector<512x1024xbf16>, vector<4x1024xf32> -> vector<4x1024xf32>
    %c0_15 = arith.constant 0 : index
    %c0_16 = arith.constant 0 : index
    %19 = vector.load %arg6[%c0_15, %c0_16] : memref<1x1024xf32, #tpu.memory_space<vmem>>, vector<1x1024xf32>
    %20 = vector.broadcast %19 : vector<1x1024xf32> to vector<4x1024xf32>
    %21 = arith.addf %18, %20 : vector<4x1024xf32>
    %22 = vector.extract_strided_slice %21 {offsets = [0, 0], sizes = [4, 256], strides = [1, 1]} : vector<4x1024xf32> to vector<4x256xf32>
    %23 = arith.negf %22 : vector<4x256xf32>
    %24 = math.exp %23 : vector<4x256xf32>
    %cst_17 = arith.constant 1.000000e+00 : f32
    %25 = vector.broadcast %cst_17 : f32 to vector<4x256xf32>
    %26 = arith.addf %25, %24 : vector<4x256xf32>
    %27 = arith.divf %25, %26 : vector<4x256xf32>
    %28 = vector.extract_strided_slice %21 {offsets = [0, 256], sizes = [4, 256], strides = [1, 1]} : vector<4x1024xf32> to vector<4x256xf32>
    %29 = arith.negf %28 : vector<4x256xf32>
    %30 = math.exp %29 : vector<4x256xf32>
    %cst_18 = arith.constant 1.000000e+00 : f32
    %31 = vector.broadcast %cst_18 : f32 to vector<4x256xf32>
    %32 = arith.addf %31, %30 : vector<4x256xf32>
    %33 = arith.divf %31, %32 : vector<4x256xf32>
    %34 = vector.extract_strided_slice %21 {offsets = [0, 512], sizes = [4, 256], strides = [1, 1]} : vector<4x1024xf32> to vector<4x256xf32>
    %35 = math.tanh %34 : vector<4x256xf32>
    %36 = vector.extract_strided_slice %21 {offsets = [0, 768], sizes = [4, 256], strides = [1, 1]} : vector<4x1024xf32> to vector<4x256xf32>
    %37 = arith.negf %36 : vector<4x256xf32>
    %38 = math.exp %37 : vector<4x256xf32>
    %cst_19 = arith.constant 1.000000e+00 : f32
    %39 = vector.broadcast %cst_19 : f32 to vector<4x256xf32>
    %40 = arith.addf %39, %38 : vector<4x256xf32>
    %41 = arith.divf %39, %40 : vector<4x256xf32>
    %42 = arith.mulf %33, %4 : vector<4x256xf32>
    %43 = arith.mulf %27, %35 : vector<4x256xf32>
    %44 = arith.addf %42, %43 : vector<4x256xf32>
    %45 = math.tanh %44 : vector<4x256xf32>
    %46 = arith.mulf %41, %45 : vector<4x256xf32>
    %c0_20 = arith.constant 0 : index
    %c0_21 = arith.constant 0 : index
    %47 = vector.load %arg1[%c0_20, %c0_21] : memref<4x1xi32, #tpu.memory_space<vmem>>, vector<4x1xi32>
    %48 = vector.broadcast %arg0 : i32 to vector<4x1xi32>
    %49 = arith.cmpi slt, %48, %47 : vector<4x1xi32>
    %50 = vector.shape_cast %49 : vector<4x1xi1> to vector<4x1xi1>
    %51 = vector.broadcast %50 : vector<4x1xi1> to vector<4x256xi1>
    %52 = arith.select %51, %46, %3 : vector<4x256xi1>, vector<4x256xf32>
    %53 = vector.shape_cast %49 : vector<4x1xi1> to vector<4x1xi1>
    %54 = vector.broadcast %53 : vector<4x1xi1> to vector<4x256xi1>
    %55 = arith.select %54, %44, %4 : vector<4x256xi1>, vector<4x256xf32>
    %c0_22 = arith.constant 0 : index
    %c0_23 = arith.constant 0 : index
    %56 = vector.load %arg14[%c0_22, %c0_23] : memref<4x256xf32, #tpu.memory_space<vmem>>, vector<4x256xf32>
    tpu.vector_store %arg14[%c0_22, %c0_23], %52 {strides = array<i32>} : memref<4x256xf32, #tpu.memory_space<vmem>>, vector<4x256xf32>,
    %c0_24 = arith.constant 0 : index
    %c0_25 = arith.constant 0 : index
    %57 = vector.load %arg15[%c0_24, %c0_25] : memref<4x256xf32, #tpu.memory_space<vmem>>, vector<4x256xf32>
    tpu.vector_store %arg15[%c0_24, %c0_25], %55 {strides = array<i32>} : memref<4x256xf32, #tpu.memory_space<vmem>>, vector<4x256xf32>,
    %cst_26 = arith.constant 0.000000e+00 : f32
    %58 = vector.shape_cast %49 : vector<4x1xi1> to vector<4x1xi1>
    %59 = vector.broadcast %58 : vector<4x1xi1> to vector<4x256xi1>
    %60 = vector.broadcast %cst_26 : f32 to vector<4x256xf32>
    %61 = arith.select %59, %52, %60 : vector<4x256xi1>, vector<4x256xf32>
    %62 = arith.truncf %61 : vector<4x256xf32> to vector<4x256xbf16>
    %c0_27 = arith.constant 0 : index
    %c0_28 = arith.constant 0 : index
    %63 = vector.load %arg7[%c0_27, %c0_28] : memref<256x256xbf16, #tpu.memory_space<vmem>>, vector<256x256xbf16>
    %cst_29 = arith.constant dense<0.000000e+00> : vector<4x256xf32>
    %64 = tpu.matmul %62, %63, %cst_29 {dimension_numbers = #tpu.dot_dimension_numbers<[1], [0], [0], [1], [0, 0, 1, 1], [], []>} : vector<4x256xbf16>, vector<256x256xbf16>, vector<4x256xf32> -> vector<4x256xf32>
    %c0_30 = arith.constant 0 : index
    %c0_31 = arith.constant 0 : index
    %65 = vector.load %arg8[%c0_30, %c0_31] : memref<1x256xf32, #tpu.memory_space<vmem>>, vector<1x256xf32>
    %66 = vector.broadcast %65 : vector<1x256xf32> to vector<4x256xf32>
    %67 = arith.addf %64, %66 : vector<4x256xf32>
    %cst_32 = arith.constant 0.000000e+00 : f32
    %68 = vector.broadcast %cst_32 : f32 to vector<4x256xf32>
    %69 = arith.maximumf %67, %68 : vector<4x256xf32>
    %70 = arith.truncf %69 : vector<4x256xf32> to vector<4x256xbf16>
    %c0_33 = arith.constant 0 : index
    %c0_34 = arith.constant 0 : index
    %71 = vector.load %arg9[%c0_33, %c0_34] : memref<256x128xbf16, #tpu.memory_space<vmem>>, vector<256x128xbf16>
    %cst_35 = arith.constant dense<0.000000e+00> : vector<4x128xf32>
    %72 = tpu.matmul %70, %71, %cst_35 {dimension_numbers = #tpu.dot_dimension_numbers<[1], [0], [0], [1], [0, 0, 1, 1], [], []>} : vector<4x256xbf16>, vector<256x128xbf16>, vector<4x128xf32> -> vector<4x128xf32>
    %c0_36 = arith.constant 0 : index
    %c0_37 = arith.constant 0 : index
    %73 = vector.load %arg10[%c0_36, %c0_37] : memref<1x128xf32, #tpu.memory_space<vmem>>, vector<1x128xf32>
    %74 = vector.broadcast %73 : vector<1x128xf32> to vector<4x128xf32>
    %75 = arith.addf %72, %74 : vector<4x128xf32>
    %cst_38 = arith.constant dense<0xFF800000> : vector<4xf32>
    %76 = vector.multi_reduction <maximumf>, %75, %cst_38 [1] : vector<4x128xf32> to vector<4xf32>
    %77 = vector.shape_cast %76 : vector<4xf32> to vector<4x1xf32>
    %78 = vector.broadcast %77 : vector<4x1xf32> to vector<4x128xf32>
    %79 = arith.subf %75, %78 : vector<4x128xf32>
    %80 = math.exp %79 : vector<4x128xf32>
    %cst_39 = arith.constant dense<0.000000e+00> : vector<4xf32>
    %81 = vector.multi_reduction <add>, %80, %cst_39 [1] : vector<4x128xf32> to vector<4xf32>
    %82 = vector.shape_cast %81 : vector<4xf32> to vector<4x1xf32>
    %83 = vector.broadcast %82 : vector<4x1xf32> to vector<4x128xf32>
    %84 = arith.divf %80, %83 : vector<4x128xf32>
    %c0_40 = arith.constant 0 : index
    %c0_41 = arith.constant 0 : index
    %c0_42 = arith.constant 0 : index
    %85 = vector.load %arg13[%c0_40, %c0_41, %c0_42] : memref<1x4x128xf32, #tpu.memory_space<vmem>>, vector<1x4x128xf32>
    %86 = vector.shape_cast %85 : vector<1x4x128xf32> to vector<4x128xf32>
    %87 = vector.shape_cast %84 : vector<4x128xf32> to vector<1x4x128xf32>
    tpu.vector_store %arg13[%c0_40, %c0_41, %c0_42], %87 {strides = array<i32>} : memref<1x4x128xf32, #tpu.memory_space<vmem>>, vector<1x4x128xf32>,
    return
  }
  func.func @transform_0(%arg0: i32) -> (i32, i32) {
    %c0_i32 = arith.constant 0 : i32
    %c0_i32_0 = arith.constant 0 : i32
    %c0_i32_1 = arith.constant 0 : i32
    return %c0_i32, %c0_i32_0 : i32, i32
  }
  func.func @transform_1(%arg0: i32) -> (i32, i32, i32) {
    %c0_i32 = arith.constant 0 : i32
    %c0_i32_0 = arith.constant 0 : i32
    %c0_i32_1 = arith.constant 0 : i32
    return %arg0, %c0_i32, %c0_i32_0 : i32, i32, i32
  }
  func.func @transform_2(%arg0: i32) -> (i32, i32) {
    %c0_i32 = arith.constant 0 : i32
    %c0_i32_0 = arith.constant 0 : i32
    %c0_i32_1 = arith.constant 0 : i32
    return %c0_i32, %c0_i32_0 : i32, i32
  }
  func.func @transform_3(%arg0: i32) -> (i32, i32) {
    %c0_i32 = arith.constant 0 : i32
    %c0_i32_0 = arith.constant 0 : i32
    %c0_i32_1 = arith.constant 0 : i32
    return %c0_i32, %c0_i32_0 : i32, i32
  }
  func.func @transform_4(%arg0: i32) -> (i32, i32) {
    %c0_i32 = arith.constant 0 : i32
    %c0_i32_0 = arith.constant 0 : i32
    %c0_i32_1 = arith.constant 0 : i32
    return %c0_i32, %c0_i32_0 : i32, i32
  }
  func.func @transform_5(%arg0: i32) -> (i32, i32) {
    %c0_i32 = arith.constant 0 : i32
    %c0_i32_0 = arith.constant 0 : i32
    %c0_i32_1 = arith.constant 0 : i32
    return %c0_i32, %c0_i32_0 : i32, i32
  }
  func.func @transform_6(%arg0: i32) -> (i32, i32) {
    %c0_i32 = arith.constant 0 : i32
    %c0_i32_0 = arith.constant 0 : i32
    %c0_i32_1 = arith.constant 0 : i32
    return %c0_i32, %c0_i32_0 : i32, i32
  }
  func.func @transform_7(%arg0: i32) -> (i32, i32) {
    %c0_i32 = arith.constant 0 : i32
    %c0_i32_0 = arith.constant 0 : i32
    %c0_i32_1 = arith.constant 0 : i32
    return %c0_i32, %c0_i32_0 : i32, i32
  }
  func.func @transform_8(%arg0: i32) -> (i32, i32) {
    %c0_i32 = arith.constant 0 : i32
    %c0_i32_0 = arith.constant 0 : i32
    %c0_i32_1 = arith.constant 0 : i32
    return %c0_i32, %c0_i32_0 : i32, i32
  }
  func.func @transform_9(%arg0: i32) -> (i32, i32) {
    %c0_i32 = arith.constant 0 : i32
    %c0_i32_0 = arith.constant 0 : i32
    %c0_i32_1 = arith.constant 0 : i32
    return %c0_i32, %c0_i32_0 : i32, i32
  }
  func.func @transform_10(%arg0: i32) -> (i32, i32) {
    %c0_i32 = arith.constant 0 : i32
    %c0_i32_0 = arith.constant 0 : i32
    %c0_i32_1 = arith.constant 0 : i32
    return %c0_i32, %c0_i32_0 : i32, i32
  }
  func.func @transform_11(%arg0: i32) -> (i32, i32) {
    %c0_i32 = arith.constant 0 : i32
    %c0_i32_0 = arith.constant 0 : i32
    %c0_i32_1 = arith.constant 0 : i32
    return %c0_i32, %c0_i32_0 : i32, i32
  }
  func.func @transform_12(%arg0: i32) -> (i32, i32, i32) {
    %c0_i32 = arith.constant 0 : i32
    %c0_i32_0 = arith.constant 0 : i32
    %c0_i32_1 = arith.constant 0 : i32
    return %arg0, %c0_i32, %c0_i32_0 : i32, i32, i32
  }
  func.func @transform_13(%arg0: i32) -> (i32, i32) {
    %c0_i32 = arith.constant 0 : i32
    %c0_i32_0 = arith.constant 0 : i32
    %c0_i32_1 = arith.constant 0 : i32
    return %c0_i32, %c0_i32_0 : i32, i32
  }
  func.func @transform_14(%arg0: i32) -> (i32, i32) {
    %c0_i32 = arith.constant 0 : i32
    %c0_i32_0 = arith.constant 0 : i32
    %c0_i32_1 = arith.constant 0 : i32
    return %c0_i32, %c0_i32_0 : i32, i32
  }
}

</mosaic_0001>

<llo_original>
// kernel: tpu_custom_call.1
$region0: #{tpu_custom_call.1}
  #allocation0 [shape = 'u32[]', space=smem, size = 0x4, offset = 0x4, fixed_abs, tag = 'smem constant byte address 0x4 - core index']
  #allocation1 [shape = 'u32[144,128]{1,0:T(1,128)}', space=vmem, size = 0x12000, scoped, tag = 'internal scratch']
  %s0 = inlined_call_operand.vmem [shape: s32[4,1], index: 0, kind: input, shape index: {}]
  %s1 = inlined_call_operand.hbm [shape: f32[8,4,16], index: 1, kind: input, shape index: {}]
  %s2 = inlined_call_operand.hbm [shape: bf16[16,256], index: 2, kind: input, shape index: {}]
  %s3 = inlined_call_operand.hbm [shape: f32[1,256], index: 3, kind: input, shape index: {}]
  %s4 = inlined_call_operand.hbm [shape: bf16[512,1024], index: 4, kind: input, shape index: {}]
  %s5 = inlined_call_operand.vmem [shape: f32[1,1024], index: 5, kind: input, shape index: {}]
  %s6 = inlined_call_operand.hbm [shape: bf16[256,256], index: 6, kind: input, shape index: {}]
  %s7 = inlined_call_operand.hbm [shape: f32[1,256], index: 7, kind: input, shape index: {}]
  %s8 = inlined_call_operand.hbm [shape: bf16[256,128], index: 8, kind: input, shape index: {}]
  %s9 = inlined_call_operand.vmem [shape: f32[1,128], index: 9, kind: input, shape index: {}]
  %s10 = inlined_call_operand.vmem [shape: f32[4,256], index: 10, kind: input, shape index: {}]
  %s11 = inlined_call_operand.vmem [shape: f32[4,256], index: 11, kind: input, shape index: {}]
  %s12 = inlined_call_operand.hbm [shape: f32[8,4,128], index: 12, kind: output, shape index: {0}]
  %s13 = inlined_call_operand.hbm [shape: f32[4,256], index: 13, kind: output, shape index: {1}]
  %s14 = inlined_call_operand.hbm [shape: f32[4,256], index: 14, kind: output, shape index: {2}]
  %15 = xla_tuple %s12, %s13, %s14
  %s16 = sld [smem:[#allocation0]]
  $region129: #{tpu_custom_call.1} parent=0
    _
  %s18 = ssub.s32 1, %s16
  %s19 = scalar_select 0, %s18, %s16
  $region1: #{tpu_custom_call.1} parent=0
    #allocation2 [shape = 'u8[4096]{0}', space=vmem, size = 0x1000, scoped, tag = 'input window, operand 1']
    #allocation3 [shape = 's32[2]{0}', space=sflag, size = 0x8, scoped, tag = 'scoped memory for tpu_custom_call.1']
    #allocation4 [shape = 's32[2]{0}', space=sflag, size = 0x8, scoped, tag = 'scoped memory for tpu_custom_call.1']
    #allocation5 [shape = 'u8[8192]{0}', space=vmem, size = 0x2000, scoped, tag = 'input window, operand 2, single buffered']
    #allocation6 [shape = 's32[1]{0}', space=sflag, size = 0x4, scoped, tag = 'scoped memory for tpu_custom_call.1']
    #allocation7 [shape = 'u8[1024]{0}', space=vmem, size = 0x400, scoped, tag = 'input window, operand 3, single buffered']
    #allocation8 [shape = 'u8[1048576]{0}', space=vmem, size = 0x100000, scoped, tag = 'input window, operand 4, single buffered']
    #allocation9 [shape = 's32[1]{0}', space=sflag, size = 0x4, scoped, tag = 'scoped memory for tpu_custom_call.1']
    #allocation10 [shape = 'u8[131072]{0}', space=vmem, size = 0x20000, scoped, tag = 'input window, operand 6, single buffered']
    #allocation11 [shape = 'u8[1024]{0}', space=vmem, size = 0x400, scoped, tag = 'input window, operand 7, single buffered']
    #allocation12 [shape = 's32[1]{0}', space=sflag, size = 0x4, scoped, tag = 'scoped memory for tpu_custom_call.1']
    #allocation13 [shape = 'u8[65536]{0}', space=vmem, size = 0x10000, scoped, tag = 'input window, operand 8, single buffered']
    #allocation14 [shape = 'u8[4096]{0}', space=vmem, size = 0x1000, scoped, tag = 'output window, operand 0']
    #allocation15 [shape = 'u8[4096]{0}', space=vmem, size = 0x1000, scoped, tag = 'output window, operand 1, single buffered']
    #allocation16 [shape = 's32[1]{0}', space=sflag, size = 0x4, scoped, tag = 'scoped memory for tpu_custom_call.1']
    #allocation17 [shape = 'u8[4096]{0}', space=vmem, size = 0x1000, scoped, tag = 'output window, operand 2, single buffered']
    %20 = vsyncpa [#allocation3], 0
    %s21 = scalar_lea.sflag [#allocation3], 1
    %22 = vsyncpa %s21, 0
    %23 = vsyncpa [#allocation6], 0
    %24 = vsyncpa [#allocation9], 0
    %25 = vsyncpa [#allocation12], 0
    %26 = vsyncpa [#allocation4], 0
    %s27 = scalar_lea.sflag [#allocation4], 1
    %28 = vsyncpa %s27, 0
    %29 = vsyncpa [#allocation16], 0
    loop: start=0, step=1, limit=10
    $region2: #{tpu_custom_call.1} parent=1 // loop_pre_header
      _
    $region3: #{tpu_custom_call.1} parent=1 // loop_header
      %s31 = sphi 0, %s35
      %p32 = scmp.ge.s32.totalorder %s31, 10
      %s39 = sphi 0, %s39
      %s41 = sphi 0, %s39
      %s42 = sphi 0, %s41
      %s56 = sphi 0, %s42
      %s62 = sphi 0, %s64
      %s65 = sphi 0, %s62
      %s66 = sphi 0, %s65
      %s82 = sphi 0, %s66
      %s86 = sphi 0, %s86
      %s88 = sphi 0, %s86
      %s89 = sphi 0, %s88
      %s103 = sphi 0, %s89
      %s107 = sphi 0, %s107
      %s109 = sphi 0, %s107
      %s110 = sphi 0, %s109
      %s124 = sphi 0, %s110
      %s128 = sphi 0, %s128
      %s130 = sphi 0, %s128
      %s131 = sphi 0, %s130
      %s145 = sphi 0, %s131
      %s149 = sphi 0, %s149
      %s151 = sphi 0, %s149
      %s152 = sphi 0, %s151
      %s166 = sphi 0, %s152
      %s170 = sphi 0, %s170
      %s172 = sphi 0, %s170
      %s173 = sphi 0, %s172
      %s187 = sphi 0, %s173
      %s191 = sphi 0, %s191
      %s193 = sphi 0, %s191
      %s194 = sphi 0, %s193
      %s208 = sphi 0, %s194
      %s212 = sphi 0, %s212
      %s214 = sphi 0, %s212
      %s215 = sphi 0, %s214
      %s229 = sphi 0, %s215
      %s233 = sphi 0, %s233
      %s235 = sphi 0, %s233
      %s236 = sphi 0, %s235
      %s250 = sphi 0, %s236
      %s254 = sphi 0, %s254
      %s256 = sphi 0, %s254
      %s257 = sphi 0, %s256
      %s271 = sphi 0, %s257
      %s275 = sphi 0, %s275
      %s277 = sphi 0, %s275
      %s278 = sphi 0, %s277
      %s292 = sphi 0, %s278
      %s298 = sphi 0, %s300
      %s301 = sphi 0, %s298
      %s302 = sphi 0, %s301
      %s318 = sphi 0, %s302
      %s322 = sphi 0, %s322
      %s324 = sphi 0, %s322
      %s325 = sphi 0, %s324
      %s339 = sphi 0, %s325
      %s343 = sphi 0, %s343
      %s345 = sphi 0, %s343
      %s346 = sphi 0, %s345
      %s360 = sphi 0, %s346
    $region4: #{tpu_custom_call.1} parent=1 // loop_header_branch
      %34 = sbr.rel (%p32) target = $region8
    $region5: #{tpu_custom_call.1} parent=1 // loop_body
      %s36 = ssub.s32 %s31, 1
      %s37 = ssub.s32 %s31, 2
      %s38 = sadd.s32 %s31, 1
      %s40 = sadd.s32 %s39, 1
      %p43 = scmp.eq.s32.totalorder %s31, 7
      %p44 = scmp.ne.s32.totalorder %s39, %s41
      %p45 = scmp.eq.s32.totalorder %s31, 0
      %p46 = por %p44, %p45
      %p47 = scmp.ne.s32.totalorder %s39, %s41
      %p48 = scmp.eq.s32.totalorder %s36, 7
      %p49 = por %p47, %p48
      %p50 = scmp.ne.s32.totalorder %s41, %s42
      %p51 = scmp.eq.s32.totalorder %s36, 0
      %p52 = por %p50, %p51
      %p53 = scmp.ne.s32.totalorder %s41, %s42
      %p54 = scmp.eq.s32.totalorder %s37, 7
      %p55 = por %p53, %p54
      %p57 = scmp.ne.s32.totalorder %s42, %s56
      %p58 = scmp.eq.s32.totalorder %s37, 0
      %p59 = por %p57, %p58
      %s60 = ssub.s32 %s31, %s38
      %p61 = scmp.eq.s32.totalorder %s60, 0
      %s63 = sadd.s32 %s62, 1
      %s64 = scalar_select %p61, %s62, %s63
      %p67 = pneg %p61
      %p68 = scmp.eq.s32.totalorder %s31, 7
      %p69 = por %p67, %p68
      %p70 = scmp.ne.s32.totalorder %s62, %s65
      %p71 = scmp.eq.s32.totalorder %s31, 0
      %p72 = por %p70, %p71
      %p73 = scmp.ne.s32.totalorder %s62, %s65
      %p74 = scmp.eq.s32.totalorder %s36, 7
      %p75 = por %p73, %p74
      %p76 = scmp.ne.s32.totalorder %s65, %s66
      %p77 = scmp.eq.s32.totalorder %s36, 0
      %p78 = por %p76, %p77
      %p79 = scmp.ne.s32.totalorder %s65, %s66
      %p80 = scmp.eq.s32.totalorder %s37, 7
      %p81 = por %p79, %p80
      %p83 = scmp.ne.s32.totalorder %s66, %s82
      %p84 = scmp.eq.s32.totalorder %s37, 0
      %p85 = por %p83, %p84
      %s87 = sadd.s32 %s86, 1
      %p90 = scmp.eq.s32.totalorder %s31, 7
      %p91 = scmp.ne.s32.totalorder %s86, %s88
      %p92 = scmp.eq.s32.totalorder %s31, 0
      %p93 = por %p91, %p92
      %p94 = scmp.ne.s32.totalorder %s86, %s88
      %p95 = scmp.eq.s32.totalorder %s36, 7
      %p96 = por %p94, %p95
      %p97 = scmp.ne.s32.totalorder %s88, %s89
      %p98 = scmp.eq.s32.totalorder %s36, 0
      %p99 = por %p97, %p98
      %p100 = scmp.ne.s32.totalorder %s88, %s89
      %p101 = scmp.eq.s32.totalorder %s37, 7
      %p102 = por %p100, %p101
      %p104 = scmp.ne.s32.totalorder %s89, %s103
      %p105 = scmp.eq.s32.totalorder %s37, 0
      %p106 = por %p104, %p105
      %s108 = sadd.s32 %s107, 1
      %p111 = scmp.eq.s32.totalorder %s31, 7
      %p112 = scmp.ne.s32.totalorder %s107, %s109
      %p113 = scmp.eq.s32.totalorder %s31, 0
      %p114 = por %p112, %p113
      %p115 = scmp.ne.s32.totalorder %s107, %s109
      %p116 = scmp.eq.s32.totalorder %s36, 7
      %p117 = por %p115, %p116
      %p118 = scmp.ne.s32.totalorder %s109, %s110
      %p119 = scmp.eq.s32.totalorder %s36, 0
      %p120 = por %p118, %p119
      %p121 = scmp.ne.s32.totalorder %s109, %s110
      %p122 = scmp.eq.s32.totalorder %s37, 7
      %p123 = por %p121, %p122
      %p125 = scmp.ne.s32.totalorder %s110, %s124
      %p126 = scmp.eq.s32.totalorder %s37, 0
      %p127 = por %p125, %p126
      %s129 = sadd.s32 %s128, 1
      %p132 = scmp.eq.s32.totalorder %s31, 7
      %p133 = scmp.ne.s32.totalorder %s128, %s130
      %p134 = scmp.eq.s32.totalorder %s31, 0
      %p135 = por %p133, %p134
      %p136 = scmp.ne.s32.totalorder %s128, %s130
      %p137 = scmp.eq.s32.totalorder %s36, 7
      %p138 = por %p136, %p137
      %p139 = scmp.ne.s32.totalorder %s130, %s131
      %p140 = scmp.eq.s32.totalorder %s36, 0
      %p141 = por %p139, %p140
      %p142 = scmp.ne.s32.totalorder %s130, %s131
      %p143 = scmp.eq.s32.totalorder %s37, 7
      %p144 = por %p142, %p143
      %p146 = scmp.ne.s32.totalorder %s131, %s145
      %p147 = scmp.eq.s32.totalorder %s37, 0
      %p148 = por %p146, %p147
      %s150 = sadd.s32 %s149, 1
      %p153 = scmp.eq.s32.totalorder %s31, 7
      %p154 = scmp.ne.s32.totalorder %s149, %s151
      %p155 = scmp.eq.s32.totalorder %s31, 0
      %p156 = por %p154, %p155
      %p157 = scmp.ne.s32.totalorder %s149, %s151
      %p158 = scmp.eq.s32.totalorder %s36, 7
      %p159 = por %p157, %p158
      %p160 = scmp.ne.s32.totalorder %s151, %s152
      %p161 = scmp.eq.s32.totalorder %s36, 0
      %p162 = por %p160, %p161
      %p163 = scmp.ne.s32.totalorder %s151, %s152
      %p164 = scmp.eq.s32.totalorder %s37, 7
      %p165 = por %p163, %p164
      %p167 = scmp.ne.s32.totalorder %s152, %s166
      %p168 = scmp.eq.s32.totalorder %s37, 0
      %p169 = por %p167, %p168
      %s171 = sadd.s32 %s170, 1
      %p174 = scmp.eq.s32.totalorder %s31, 7
      %p175 = scmp.ne.s32.totalorder %s170, %s172
      %p176 = scmp.eq.s32.totalorder %s31, 0
      %p177 = por %p175, %p176
      %p178 = scmp.ne.s32.totalorder %s170, %s172
      %p179 = scmp.eq.s32.totalorder %s36, 7
      %p180 = por %p178, %p179
      %p181 = scmp.ne.s32.totalorder %s172, %s173
      %p182 = scmp.eq.s32.totalorder %s36, 0
      %p183 = por %p181, %p182
      %p184 = scmp.ne.s32.totalorder %s172, %s173
      %p185 = scmp.eq.s32.totalorder %s37, 7
      %p186 = por %p184, %p185
      %p188 = scmp.ne.s32.totalorder %s173, %s187
      %p189 = scmp.eq.s32.totalorder %s37, 0
      %p190 = por %p188, %p189
      %s192 = sadd.s32 %s191, 1
      %p195 = scmp.eq.s32.totalorder %s31, 7
      %p196 = scmp.ne.s32.totalorder %s191, %s193
      %p197 = scmp.eq.s32.totalorder %s31, 0
      %p198 = por %p196, %p197
      %p199 = scmp.ne.s32.totalorder %s191, %s193
      %p200 = scmp.eq.s32.totalorder %s36, 7
      %p201 = por %p199, %p200
      %p202 = scmp.ne.s32.totalorder %s193, %s194
      %p203 = scmp.eq.s32.totalorder %s36, 0
      %p204 = por %p202, %p203
      %p205 = scmp.ne.s32.totalorder %s193, %s194
      %p206 = scmp.eq.s32.totalorder %s37, 7
      %p207 = por %p205, %p206
      %p209 = scmp.ne.s32.totalorder %s194, %s208
      %p210 = scmp.eq.s32.totalorder %s37, 0
      %p211 = por %p209, %p210
      %s213 = sadd.s32 %s212, 1
      %p216 = scmp.eq.s32.totalorder %s31, 7
      %p217 = scmp.ne.s32.totalorder %s212, %s214
      %p218 = scmp.eq.s32.totalorder %s31, 0
      %p219 = por %p217, %p218
      %p220 = scmp.ne.s32.totalorder %s212, %s214
      %p221 = scmp.eq.s32.totalorder %s36, 7
      %p222 = por %p220, %p221
      %p223 = scmp.ne.s32.totalorder %s214, %s215
      %p224 = scmp.eq.s32.totalorder %s36, 0
      %p225 = por %p223, %p224
      %p226 = scmp.ne.s32.totalorder %s214, %s215
      %p227 = scmp.eq.s32.totalorder %s37, 7
      %p228 = por %p226, %p227
      %p230 = scmp.ne.s32.totalorder %s215, %s229
      %p231 = scmp.eq.s32.totalorder %s37, 0
      %p232 = por %p230, %p231
      %s234 = sadd.s32 %s233, 1
      %p237 = scmp.eq.s32.totalorder %s31, 7
      %p238 = scmp.ne.s32.totalorder %s233, %s235
      %p239 = scmp.eq.s32.totalorder %s31, 0
      %p240 = por %p238, %p239
      %p241 = scmp.ne.s32.totalorder %s233, %s235
      %p242 = scmp.eq.s32.totalorder %s36, 7
      %p243 = por %p241, %p242
      %p244 = scmp.ne.s32.totalorder %s235, %s236
      %p245 = scmp.eq.s32.totalorder %s36, 0
      %p246 = por %p244, %p245
      %p247 = scmp.ne.s32.totalorder %s235, %s236
      %p248 = scmp.eq.s32.totalorder %s37, 7
      %p249 = por %p247, %p248
      %p251 = scmp.ne.s32.totalorder %s236, %s250
      %p252 = scmp.eq.s32.totalorder %s37, 0
      %p253 = por %p251, %p252
      %s255 = sadd.s32 %s254, 1
      %p258 = scmp.eq.s32.totalorder %s31, 7
      %p259 = scmp.ne.s32.totalorder %s254, %s256
      %p260 = scmp.eq.s32.totalorder %s31, 0
      %p261 = por %p259, %p260
      %p262 = scmp.ne.s32.totalorder %s254, %s256
      %p263 = scmp.eq.s32.totalorder %s36, 7
      %p264 = por %p262, %p263
      %p265 = scmp.ne.s32.totalorder %s256, %s257
      %p266 = scmp.eq.s32.totalorder %s36, 0
      %p267 = por %p265, %p266
      %p268 = scmp.ne.s32.totalorder %s256, %s257
      %p269 = scmp.eq.s32.totalorder %s37, 7
      %p270 = por %p268, %p269
      %p272 = scmp.ne.s32.totalorder %s257, %s271
      %p273 = scmp.eq.s32.totalorder %s37, 0
      %p274 = por %p272, %p273
      %s276 = sadd.s32 %s275, 1
      %p279 = scmp.eq.s32.totalorder %s31, 7
      %p280 = scmp.ne.s32.totalorder %s275, %s277
      %p281 = scmp.eq.s32.totalorder %s31, 0
      %p282 = por %p280, %p281
      %p283 = scmp.ne.s32.totalorder %s275, %s277
      %p284 = scmp.eq.s32.totalorder %s36, 7
      %p285 = por %p283, %p284
      %p286 = scmp.ne.s32.totalorder %s277, %s278
      %p287 = scmp.eq.s32.totalorder %s36, 0
      %p288 = por %p286, %p287
      %p289 = scmp.ne.s32.totalorder %s277, %s278
      %p290 = scmp.eq.s32.totalorder %s37, 7
      %p291 = por %p289, %p290
      %p293 = scmp.ne.s32.totalorder %s278, %s292
      %p294 = scmp.eq.s32.totalorder %s37, 0
      %p295 = por %p293, %p294
      %s296 = ssub.s32 %s31, %s38
      %p297 = scmp.eq.s32.totalorder %s296, 0
      %s299 = sadd.s32 %s298, 1
      %s300 = scalar_select %p297, %s298, %s299
      %p303 = pneg %p297
      %p304 = scmp.eq.s32.totalorder %s31, 7
      %p305 = por %p303, %p304
      %p306 = scmp.ne.s32.totalorder %s298, %s301
      %p307 = scmp.eq.s32.totalorder %s31, 0
      %p308 = por %p306, %p307
      %p309 = scmp.ne.s32.totalorder %s298, %s301
      %p310 = scmp.eq.s32.totalorder %s36, 7
      %p311 = por %p309, %p310
      %p312 = scmp.ne.s32.totalorder %s301, %s302
      %p313 = scmp.eq.s32.totalorder %s36, 0
      %p314 = por %p312, %p313
      %p315 = scmp.ne.s32.totalorder %s301, %s302
      %p316 = scmp.eq.s32.totalorder %s37, 7
      %p317 = por %p315, %p316
      %p319 = scmp.ne.s32.totalorder %s302, %s318
      %p320 = scmp.eq.s32.totalorder %s37, 0
      %p321 = por %p319, %p320
      %s323 = sadd.s32 %s322, 1
      %p326 = scmp.eq.s32.totalorder %s31, 7
      %p327 = scmp.ne.s32.totalorder %s322, %s324
      %p328 = scmp.eq.s32.totalorder %s31, 0
      %p329 = por %p327, %p328
      %p330 = scmp.ne.s32.totalorder %s322, %s324
      %p331 = scmp.eq.s32.totalorder %s36, 7
      %p332 = por %p330, %p331
      %p333 = scmp.ne.s32.totalorder %s324, %s325
      %p334 = scmp.eq.s32.totalorder %s36, 0
      %p335 = por %p333, %p334
      %p336 = scmp.ne.s32.totalorder %s324, %s325
      %p337 = scmp.eq.s32.totalorder %s37, 7
      %p338 = por %p336, %p337
      %p340 = scmp.ne.s32.totalorder %s325, %s339
      %p341 = scmp.eq.s32.totalorder %s37, 0
      %p342 = por %p340, %p341
      %s344 = sadd.s32 %s343, 1
      %p347 = scmp.eq.s32.totalorder %s31, 7
      %p348 = scmp.ne.s32.totalorder %s343, %s345
      %p349 = scmp.eq.s32.totalorder %s31, 0
      %p350 = por %p348, %p349
      %p351 = scmp.ne.s32.totalorder %s343, %s345
      %p352 = scmp.eq.s32.totalorder %s36, 7
      %p353 = por %p351, %p352
      %p354 = scmp.ne.s32.totalorder %s345, %s346
      %p355 = scmp.eq.s32.totalorder %s36, 0
      %p356 = por %p354, %p355
      %p357 = scmp.ne.s32.totalorder %s345, %s346
      %p358 = scmp.eq.s32.totalorder %s37, 7
      %p359 = por %p357, %p358
      %p361 = scmp.ne.s32.totalorder %s346, %s360
      %p362 = scmp.eq.s32.totalorder %s37, 0
      %p363 = por %p361, %p362
      %p364 = scmp.le.s32.totalorder 1, %s31
      %p365 = scmp.lt.s32.totalorder %s31, 9
      %p366 = pnand %p364, %p365
      %p367 = pneg %p366
      // Predicated region
      $region9: #{tpu_custom_call.1} parent=5 // pred_check
        _
      $region10: #{tpu_custom_call.1} parent=5 // pred_check_branch
        %369 = sbr.rel (%p366) target = $region12
      $region11: #{tpu_custom_call.1} parent=5 // pred_region
        %s370 = ssub.s32 %s31, 1
        // Predicated region
        $region13: #{tpu_custom_call.1} parent=11 // pred_check
          %p371 = pneg %p52
        $region14: #{tpu_custom_call.1} parent=11 // pred_check_branch
          %373 = sbr.rel (%p371) target = $region16
        $region15: #{tpu_custom_call.1} parent=11 // pred_region
          _
        $region16: #{tpu_custom_call.1} parent=11 // pred_fallthru
          _
        // Predicated region
        $region17: #{tpu_custom_call.1} parent=11 // pred_check
          %p374 = pneg %p99
        $region18: #{tpu_custom_call.1} parent=11 // pred_check_branch
          %376 = sbr.rel (%p374) target = $region20
        $region19: #{tpu_custom_call.1} parent=11 // pred_region
          %s378 = ssub.s32 256, 256
          %379 = vsyncadd [#allocation6], %s378
          %s380 = sshll.u32 [#allocation5], 4
          %s381 = int_to_ptr.vmem [resolvable:$true] %s380
          %386 = dma.hbm_to_vmem [thread:$0]  %s2, 256, %s381, [#allocation6], 128, 128, 8
        $region20: #{tpu_custom_call.1} parent=11 // pred_fallthru
          _
        // Predicated region
        $region21: #{tpu_custom_call.1} parent=11 // pred_check
          %p387 = pneg %p120
        $region22: #{tpu_custom_call.1} parent=11 // pred_check_branch
          %389 = sbr.rel (%p387) target = $region24
        $region23: #{tpu_custom_call.1} parent=11 // pred_region
          %s391 = ssub.s32 32, 32
          %392 = vsyncadd [#allocation6], %s391
          %s394 = sshll.u32 [#allocation7], 4
          %s395 = int_to_ptr.vmem [resolvable:$true] %s394
          %397 = dma.hbm_to_vmem [thread:$0]  %s3, 32, %s395, [#allocation6]
        $region24: #{tpu_custom_call.1} parent=11 // pred_fallthru
          _
        // Predicated region
        $region25: #{tpu_custom_call.1} parent=11 // pred_check
          %p398 = pneg %p141
        $region26: #{tpu_custom_call.1} parent=11 // pred_check_branch
          %400 = sbr.rel (%p398) target = $region28
        $region27: #{tpu_custom_call.1} parent=11 // pred_region
          %s402 = ssub.s32 32768, 32768
          %403 = vsyncadd [#allocation9], %s402
          %s404 = sshll.u32 [#allocation8], 4
          %s405 = int_to_ptr.vmem [resolvable:$true] %s404
          %410 = dma.hbm_to_vmem [thread:$0]  %s4, 32768, %s405, [#allocation9], 512, 512, 32
        $region28: #{tpu_custom_call.1} parent=11 // pred_fallthru
          _
        // Predicated region
        $region29: #{tpu_custom_call.1} parent=11 // pred_check
          %p411 = pneg %p162
        $region30: #{tpu_custom_call.1} parent=11 // pred_check_branch
          %413 = sbr.rel (%p411) target = $region32
        $region31: #{tpu_custom_call.1} parent=11 // pred_region
          _
        $region32: #{tpu_custom_call.1} parent=11 // pred_fallthru
          _
        // Predicated region
        $region33: #{tpu_custom_call.1} parent=11 // pred_check
          %p414 = pneg %p183
        $region34: #{tpu_custom_call.1} parent=11 // pred_check_branch
          %416 = sbr.rel (%p414) target = $region36
        $region35: #{tpu_custom_call.1} parent=11 // pred_region
          %s418 = ssub.s32 4096, 4096
          %419 = vsyncadd [#allocation9], %s418
          %s420 = sshll.u32 [#allocation10], 4
          %s421 = int_to_ptr.vmem [resolvable:$true] %s420
          %426 = dma.hbm_to_vmem [thread:$0]  %s6, 4096, %s421, [#allocation9], 128, 128, 8
        $region36: #{tpu_custom_call.1} parent=11 // pred_fallthru
          _
        // Predicated region
        $region37: #{tpu_custom_call.1} parent=11 // pred_check
          %p427 = pneg %p204
        $region38: #{tpu_custom_call.1} parent=11 // pred_check_branch
          %429 = sbr.rel (%p427) target = $region40
        $region39: #{tpu_custom_call.1} parent=11 // pred_region
          %s431 = ssub.s32 32, 32
          %432 = vsyncadd [#allocation12], %s431
          %s434 = sshll.u32 [#allocation11], 4
          %s435 = int_to_ptr.vmem [resolvable:$true] %s434
          %437 = dma.hbm_to_vmem [thread:$0]  %s7, 32, %s435, [#allocation12]
        $region40: #{tpu_custom_call.1} parent=11 // pred_fallthru
          _
        // Predicated region
        $region41: #{tpu_custom_call.1} parent=11 // pred_check
          %p438 = pneg %p225
        $region42: #{tpu_custom_call.1} parent=11 // pred_check_branch
          %440 = sbr.rel (%p438) target = $region44
        $region43: #{tpu_custom_call.1} parent=11 // pred_region
          %s442 = ssub.s32 2048, 2048
          %443 = vsyncadd [#allocation12], %s442
          %s444 = sshll.u32 [#allocation13], 4
          %s445 = int_to_ptr.vmem [resolvable:$true] %s444
          %450 = dma.hbm_to_vmem [thread:$0]  %s8, 2048, %s445, [#allocation12], 64, 64, 4
        $region44: #{tpu_custom_call.1} parent=11 // pred_fallthru
          _
        // Predicated region
        $region45: #{tpu_custom_call.1} parent=11 // pred_check
          %p451 = pneg %p246
        $region46: #{tpu_custom_call.1} parent=11 // pred_check_branch
          %453 = sbr.rel (%p451) target = $region48
        $region47: #{tpu_custom_call.1} parent=11 // pred_region
          _
        $region48: #{tpu_custom_call.1} parent=11 // pred_fallthru
          _
        // Predicated region
        $region49: #{tpu_custom_call.1} parent=11 // pred_check
          %p454 = pneg %p267
        $region50: #{tpu_custom_call.1} parent=11 // pred_check_branch
          %456 = sbr.rel (%p454) target = $region52
        $region51: #{tpu_custom_call.1} parent=11 // pred_region
          _
        $region52: #{tpu_custom_call.1} parent=11 // pred_fallthru
          _
        // Predicated region
        $region53: #{tpu_custom_call.1} parent=11 // pred_check
          %p457 = pneg %p288
        $region54: #{tpu_custom_call.1} parent=11 // pred_check_branch
          %459 = sbr.rel (%p457) target = $region56
        $region55: #{tpu_custom_call.1} parent=11 // pred_region
          _
        $region56: #{tpu_custom_call.1} parent=11 // pred_fallthru
          _
      $region12: #{tpu_custom_call.1} parent=5 // pred_fallthru
        _
      %p460 = scmp.lt.s32.totalorder %s31, 8
      // Predicated region
      $region57: #{tpu_custom_call.1} parent=5 // pred_check
        %p461 = pneg %p460
      $region58: #{tpu_custom_call.1} parent=5 // pred_check_branch
        %463 = sbr.rel (%p461) target = $region60
      $region59: #{tpu_custom_call.1} parent=5 // pred_region
        // Predicated region
        $region61: #{tpu_custom_call.1} parent=59 // pred_check
          %p464 = pneg %p72
        $region62: #{tpu_custom_call.1} parent=59 // pred_check_branch
          %466 = sbr.rel (%p464) target = $region64
        $region63: #{tpu_custom_call.1} parent=59 // pred_region
          %s467 = sand.u32 %s62, 1
          %s468 = scalar_lea.sflag [#allocation3], %s467
          %s469 = sand.u32 %s62, 1
          %s470 = smul.addr %s469, 4
          %s471 = scalar_lea.vmem [#allocation2], %s470
          %s473 = ssub.s32 64, 64
          %474 = vsyncadd %s468, %s473
          %s475 = smul.addr %s31, 64
          %s476 = scalar_lea.hbm %s1, %s475
          %s478 = sshll.u32 %s471, 4
          %s479 = int_to_ptr.vmem [resolvable:$true] %s478
          %481 = dma.hbm_to_vmem [thread:$0]  %s476, 64, %s479, %s468
        $region64: #{tpu_custom_call.1} parent=59 // pred_fallthru
          _
      $region60: #{tpu_custom_call.1} parent=5 // pred_fallthru
        _
      %p482 = scmp.le.s32.totalorder 1, %s31
      %p483 = scmp.lt.s32.totalorder %s31, 9
      %p484 = pnand %p482, %p483
      %p485 = pneg %p484
      // Predicated region
      $region65: #{tpu_custom_call.1} parent=5 // pred_check
        _
      $region66: #{tpu_custom_call.1} parent=5 // pred_check_branch
        %487 = sbr.rel (%p484) target = $region68
      $region67: #{tpu_custom_call.1} parent=5 // pred_region
        %s488 = ssub.s32 %s31, 1
        %s489 = sand.u32 %s65, 1
        %s490 = scalar_lea.sflag [#allocation3], %s489
        %s491 = sand.u32 %s65, 1
        %s492 = smul.addr %s491, 4
        %s493 = scalar_lea.vmem [#allocation2], %s492
        // Predicated region
        $region69: #{tpu_custom_call.1} parent=67 // pred_check
          %p494 = pneg %p78
        $region70: #{tpu_custom_call.1} parent=67 // pred_check_branch
          %496 = sbr.rel (%p494) target = $region72
        $region71: #{tpu_custom_call.1} parent=67 // pred_region
          %497 = dma.done %s490, 64
        $region72: #{tpu_custom_call.1} parent=67 // pred_fallthru
          _
        // Predicated region
        $region73: #{tpu_custom_call.1} parent=67 // pred_check
          %p498 = pneg %p99
        $region74: #{tpu_custom_call.1} parent=67 // pred_check_branch
          %500 = sbr.rel (%p498) target = $region76
        $region75: #{tpu_custom_call.1} parent=67 // pred_region
          %501 = dma.done [#allocation6], 256
        $region76: #{tpu_custom_call.1} parent=67 // pred_fallthru
          _
        // Predicated region
        $region77: #{tpu_custom_call.1} parent=67 // pred_check
          %p502 = pneg %p120
        $region78: #{tpu_custom_call.1} parent=67 // pred_check_branch
          %504 = sbr.rel (%p502) target = $region80
        $region79: #{tpu_custom_call.1} parent=67 // pred_region
          %505 = dma.done [#allocation6], 32
        $region80: #{tpu_custom_call.1} parent=67 // pred_fallthru
          _
        // Predicated region
        $region81: #{tpu_custom_call.1} parent=67 // pred_check
          %p506 = pneg %p141
        $region82: #{tpu_custom_call.1} parent=67 // pred_check_branch
          %508 = sbr.rel (%p506) target = $region84
        $region83: #{tpu_custom_call.1} parent=67 // pred_region
          %509 = dma.done [#allocation9], 32768
        $region84: #{tpu_custom_call.1} parent=67 // pred_fallthru
          _
        // Predicated region
        $region85: #{tpu_custom_call.1} parent=67 // pred_check
          %p510 = pneg %p183
        $region86: #{tpu_custom_call.1} parent=67 // pred_check_branch
          %512 = sbr.rel (%p510) target = $region88
        $region87: #{tpu_custom_call.1} parent=67 // pred_region
          %513 = dma.done [#allocation9], 4096
        $region88: #{tpu_custom_call.1} parent=67 // pred_fallthru
          _
        // Predicated region
        $region89: #{tpu_custom_call.1} parent=67 // pred_check
          %p514 = pneg %p204
        $region90: #{tpu_custom_call.1} parent=67 // pred_check_branch
          %516 = sbr.rel (%p514) target = $region92
        $region91: #{tpu_custom_call.1} parent=67 // pred_region
          %517 = dma.done [#allocation12], 32
        $region92: #{tpu_custom_call.1} parent=67 // pred_fallthru
          _
        // Predicated region
        $region93: #{tpu_custom_call.1} parent=67 // pred_check
          %p518 = pneg %p225
        $region94: #{tpu_custom_call.1} parent=67 // pred_check_branch
          %520 = sbr.rel (%p518) target = $region96
        $region95: #{tpu_custom_call.1} parent=67 // pred_region
          %521 = dma.done [#allocation12], 2048
        $region96: #{tpu_custom_call.1} parent=67 // pred_fallthru
          _
        %p522 = pneg %p52
        %p523 = pneg %p49
        %s524 = sand.u32 %s65, 1
        %s525 = scalar_lea.sflag [#allocation3], %s524
        %s526 = sand.u32 %s65, 1
        %s527 = smul.addr %s526, 4
        %s528 = scalar_lea.vmem [#allocation2], %s527
        %p529 = pneg %p78
        %p530 = pneg %p75
        %p531 = pneg %p99
        %p532 = pneg %p96
        %p533 = pneg %p120
        %p534 = pneg %p117
        %p535 = pneg %p141
        %p536 = pneg %p138
        %p537 = pneg %p162
        %p538 = pneg %p159
        %p539 = pneg %p183
        %p540 = pneg %p180
        %p541 = pneg %p204
        %p542 = pneg %p201
        %p543 = pneg %p225
        %p544 = pneg %p222
        %p545 = pneg %p246
        %p546 = pneg %p243
        %p547 = pneg %p267
        %p548 = pneg %p264
        %p549 = pneg %p288
        %p550 = pneg %p285
        %p551 = pneg %p314
        %p552 = pneg %p311
        %s553 = sand.u32 %s301, 1
        %s554 = scalar_lea.sflag [#allocation4], %s553
        %s555 = sand.u32 %s301, 1
        %s556 = smul.addr %s555, 4
        %s557 = scalar_lea.vmem [#allocation14], %s556
        %p558 = pneg %p335
        %p559 = pneg %p332
        %p560 = pneg %p356
        %p561 = pneg %p353
        %p563 = scmp.eq.s32.totalorder %s36, 0
        // Predicated region
        $region97: #{tpu_custom_call.1} parent=67 // pred_check
          %p564 = pneg %p563
        $region98: #{tpu_custom_call.1} parent=67 // pred_check_branch
          %566 = sbr.rel (%p564) target = $region100
        $region99: #{tpu_custom_call.1} parent=67 // pred_region
          %v567 = vld [vmem:[%s10] sm:$0xff]
          %568 = vst [vmem:[#allocation15] sm:$0xff] %v567
          %v569 = vld [vmem:[%s11] sm:$0xff]
          %570 = vst [vmem:[#allocation17] sm:$0xff] %v569
        $region100: #{tpu_custom_call.1} parent=67 // pred_fallthru
          _
        %v571 = vld [vmem:[#allocation15] sm:$0xff]
        %v572 = vld [vmem:[#allocation17] sm:$0xff]
        %v573 = vld [vmem:[%s493] sm:$0xf]
        %v574 = vpack.c.bf16 %v573, %v573
        %v575 = vld [vmem:[#allocation5] sm:$0xff]
        %v576 = vld [vmem:[#allocation5 + $0x8] sm:$0xff]
        %v577 = vld [vmem:[#allocation7] sm:$0x3]
        %v579 = vlaneseq
        %v580 = vshrl.u32 %v579, 7
        %v581 = vsub.s32 0, %v580
        %v582 = vrot.slane %v577, %v581
        %v583 = vlaneseq
        %v584 = vshrl.u32 %v583, 7
        %v585 = vsub.s32 1, %v584
        %v586 = vrot.slane %v577, %v585
        %v591 = vunpack.c.l.b16 %v575
        %v592 = vunpack.c.h.b16 %v575
        %v593 = vunpack.c.l.b16 %v576
        %v594 = vunpack.c.h.b16 %v576
        %v595 = vpack.c.b16 %v593, %v591
        %v596 = vpack.c.b16 %v594, %v592
        %vm599 = vcmask 130048
        %v601 = vsel %vm599, %v574, 0
        %603 = vmatprep.subr.bf16.mxu0 0
        %604 = vmatpush1.bf16.msra.mxu0 0
        %605 = vmatprep.subr.bf16.mxu0 0
        %606 = vmatpush1.bf16.msra.mxu0 0
        %607 = vmatprep.subr.bf16.mxu0 0
        %608 = vmatpush1.bf16.msra.mxu0 0
        %609 = vmatprep.subr.bf16.mxu0 0
        %610 = vmatpush1.bf16.msra.mxu0 0
        %611 = vmatprep.subr.bf16.mxu0 0
        %612 = vmatpush1.bf16.msra.mxu0 0
        %613 = vmatprep.subr.bf16.mxu0 0
        %614 = vmatpush1.bf16.msra.mxu0 0
        %615 = vmatprep.subr.bf16.mxu0 0
        %616 = vmatpush1.bf16.msra.mxu0 0
        %617 = vmatprep.subr.bf16.mxu0 %v596
        %618 = vmatpush1.bf16.msra.mxu0 %v595
        %619 = vmatprep.subr.bf16.mxu0 0
        %620 = vmatpush2.bf16.msra.mxu0 0
        %621 = vmatprep.subr.bf16.mxu0 0
        %622 = vmatpush2.bf16.msra.mxu0 0
        %623 = vmatprep.subr.bf16.mxu0 0
        %624 = vmatpush2.bf16.msra.mxu0 0
        %625 = vmatprep.subr.bf16.mxu0 0
        %626 = vmatpush2.bf16.msra.mxu0 0
        %627 = vmatprep.subr.bf16.mxu0 0
        %628 = vmatpush2.bf16.msra.mxu0 0
        %629 = vmatprep.subr.bf16.mxu0 0
        %630 = vmatpush2.bf16.msra.mxu0 0
        %631 = vmatprep.subr.bf16.mxu0 0
        %632 = vmatpush2.bf16.msra.mxu0 0
        %633 = vmatprep.subr.bf16.mxu0 0
        %634 = vmatpush2.bf16.msra.mxu0 0
        %635 = vmatprep.mubr.bf16.mxu0 0
        %636 = vmatmul.mubr.bf16.gmra.mxu0 %v601
        %v637 = vpop.f32.mrf.mxu0
        %v638 = vadd.f32 %v582, %v637
        %v639 = vpop.f32.mrf.mxu0
        %v640 = vadd.f32 %v586, %v639
        %v641 = vpop.f32.mrf.mxu0
        %v642 = vpop.f32.mrf.mxu0
        %643 = vdwg.mxu0
        %v644 = vmax.f32 %v638, 0.0
        %v645 = vmax.f32 %v640, 0.0
        %v647 = vcombine.high %v571, %v571
        %v649 = vpack.c.bf16 %v644, %v644
        %v650 = vpack.c.bf16 %v645, %v645
        %v651 = vpack.c.bf16 %v571, %v571
        %v652 = vpack.c.bf16 %v647, %v647
        %v653 = vld [vmem:[#allocation8] sm:$0xff]
        %v654 = vld [vmem:[#allocation8 + $0x8] sm:$0xff]
        %v655 = vld [vmem:[#allocation8 + $0x10] sm:$0xff]
        %v656 = vld [vmem:[#allocation8 + $0x18] sm:$0xff]
        %v657 = vld [vmem:[#allocation8 + $0x20] sm:$0xff]
        %v658 = vld [vmem:[#allocation8 + $0x28] sm:$0xff]
        %v659 = vld [vmem:[#allocation8 + $0x30] sm:$0xff]
        %v660 = vld [vmem:[#allocation8 + $0x38] sm:$0xff]
        %v661 = vld [vmem:[#allocation8 + $0x40] sm:$0xff]
        %v662 = vld [vmem:[#allocation8 + $0x48] sm:$0xff]
        %v663 = vld [vmem:[#allocation8 + $0x50] sm:$0xff]
        %v664 = vld [vmem:[#allocation8 + $0x58] sm:$0xff]
        %v665 = vld [vmem:[#allocation8 + $0x60] sm:$0xff]
        %v666 = vld [vmem:[#allocation8 + $0x68] sm:$0xff]
        %v667 = vld [vmem:[#allocation8 + $0x70] sm:$0xff]
        %v668 = vld [vmem:[#allocation8 + $0x78] sm:$0xff]
        %v669 = vld [vmem:[#allocation8 + $0x80] sm:$0xff]
        %v670 = vld [vmem:[#allocation8 + $0x88] sm:$0xff]
        %v671 = vld [vmem:[#allocation8 + $0x90] sm:$0xff]
        %v672 = vld [vmem:[#allocation8 + $0x98] sm:$0xff]
        %v673 = vld [vmem:[#allocation8 + $0xa0] sm:$0xff]
        %v674 = vld [vmem:[#allocation8 + $0xa8] sm:$0xff]
        %v675 = vld [vmem:[#allocation8 + $0xb0] sm:$0xff]
        %v676 = vld [vmem:[#allocation8 + $0xb8] sm:$0xff]
        %v677 = vld [vmem:[#allocation8 + $0xc0] sm:$0xff]
        %v678 = vld [vmem:[#allocation8 + $0xc8] sm:$0xff]
        %v679 = vld [vmem:[#allocation8 + $0xd0] sm:$0xff]
        %v680 = vld [vmem:[#allocation8 + $0xd8] sm:$0xff]
        %v681 = vld [vmem:[#allocation8 + $0xe0] sm:$0xff]
        %v682 = vld [vmem:[#allocation8 + $0xe8] sm:$0xff]
        %v683 = vld [vmem:[#allocation8 + $0xf0] sm:$0xff]
        %v684 = vld [vmem:[#allocation8 + $0xf8] sm:$0xff]
        %v685 = vld [vmem:[#allocation8 + $0x100] sm:$0xff]
        %v686 = vld [vmem:[#allocation8 + $0x108] sm:$0xff]
        %v687 = vld [vmem:[#allocation8 + $0x110] sm:$0xff]
        %v688 = vld [vmem:[#allocation8 + $0x118] sm:$0xff]
        %v689 = vld [vmem:[#allocation8 + $0x120] sm:$0xff]
        %v690 = vld [vmem:[#allocation8 + $0x128] sm:$0xff]
        %v691 = vld [vmem:[#allocation8 + $0x130] sm:$0xff]
        %v692 = vld [vmem:[#allocation8 + $0x138] sm:$0xff]
        %v693 = vld [vmem:[#allocation8 + $0x140] sm:$0xff]
        %v694 = vld [vmem:[#allocation8 + $0x148] sm:$0xff]
        %v695 = vld [vmem:[#allocation8 + $0x150] sm:$0xff]
        %v696 = vld [vmem:[#allocation8 + $0x158] sm:$0xff]
        %v697 = vld [vmem:[#allocation8 + $0x160] sm:$0xff]
        %v698 = vld [vmem:[#allocation8 + $0x168] sm:$0xff]
        %v699 = vld [vmem:[#allocation8 + $0x170] sm:$0xff]
        %v700 = vld [vmem:[#allocation8 + $0x178] sm:$0xff]
        %v701 = vld [vmem:[#allocation8 + $0x180] sm:$0xff]
        %v702 = vld [vmem:[#allocation8 + $0x188] sm:$0xff]
        %v703 = vld [vmem:[#allocation8 + $0x190] sm:$0xff]
        %v704 = vld [vmem:[#allocation8 + $0x198] sm:$0xff]
        %v705 = vld [vmem:[#allocation8 + $0x1a0] sm:$0xff]
        %v706 = vld [vmem:[#allocation8 + $0x1a8] sm:$0xff]
        %v707 = vld [vmem:[#allocation8 + $0x1b0] sm:$0xff]
        %v708 = vld [vmem:[#allocation8 + $0x1b8] sm:$0xff]
        %v709 = vld [vmem:[#allocation8 + $0x1c0] sm:$0xff]
        %v710 = vld [vmem:[#allocation8 + $0x1c8] sm:$0xff]
        %v711 = vld [vmem:[#allocation8 + $0x1d0] sm:$0xff]
        %v712 = vld [vmem:[#allocation8 + $0x1d8] sm:$0xff]
        %v713 = vld [vmem:[#allocation8 + $0x1e0] sm:$0xff]
        %v714 = vld [vmem:[#allocation8 + $0x1e8] sm:$0xff]
        %v715 = vld [vmem:[#allocation8 + $0x1f0] sm:$0xff]
        %v716 = vld [vmem:[#allocation8 + $0x1f8] sm:$0xff]
        %v717 = vld [vmem:[#allocation8 + $0x200] sm:$0xff]
        %v718 = vld [vmem:[#allocation8 + $0x208] sm:$0xff]
        %v719 = vld [vmem:[#allocation8 + $0x210] sm:$0xff]
        %v720 = vld [vmem:[#allocation8 + $0x218] sm:$0xff]
        %v721 = vld [vmem:[#allocation8 + $0x220] sm:$0xff]
        %v722 = vld [vmem:[#allocation8 + $0x228] sm:$0xff]
        %v723 = vld [vmem:[#allocation8 + $0x230] sm:$0xff]
        %v724 = vld [vmem:[#allocation8 + $0x238] sm:$0xff]
        %v725 = vld [vmem:[#allocation8 + $0x240] sm:$0xff]
        %v726 = vld [vmem:[#allocation8 + $0x248] sm:$0xff]
        %v727 = vld [vmem:[#allocation8 + $0x250] sm:$0xff]
        %v728 = vld [vmem:[#allocation8 + $0x258] sm:$0xff]
        %v729 = vld [vmem:[#allocation8 + $0x260] sm:$0xff]
        %v730 = vld [vmem:[#allocation8 + $0x268] sm:$0xff]
        %v731 = vld [vmem:[#allocation8 + $0x270] sm:$0xff]
        %v732 = vld [vmem:[#allocation8 + $0x278] sm:$0xff]
        %v733 = vld [vmem:[#allocation8 + $0x280] sm:$0xff]
        %v734 = vld [vmem:[#allocation8 + $0x288] sm:$0xff]
        %v735 = vld [vmem:[#allocation8 + $0x290] sm:$0xff]
        %v736 = vld [vmem:[#allocation8 + $0x298] sm:$0xff]
        %v737 = vld [vmem:[#allocation8 + $0x2a0] sm:$0xff]
        %v738 = vld [vmem:[#allocation8 + $0x2a8] sm:$0xff]
        %v739 = vld [vmem:[#allocation8 + $0x2b0] sm:$0xff]
        %v740 = vld [vmem:[#allocation8 + $0x2b8] sm:$0xff]
        %v741 = vld [vmem:[#allocation8 + $0x2c0] sm:$0xff]
        %v742 = vld [vmem:[#allocation8 + $0x2c8] sm:$0xff]
        %v743 = vld [vmem:[#allocation8 + $0x2d0] sm:$0xff]
        %v744 = vld [vmem:[#allocation8 + $0x2d8] sm:$0xff]
        %v745 = vld [vmem:[#allocation8 + $0x2e0] sm:$0xff]
        %v746 = vld [vmem:[#allocation8 + $0x2e8] sm:$0xff]
        %v747 = vld [vmem:[#allocation8 + $0x2f0] sm:$0xff]
        %v748 = vld [vmem:[#allocation8 + $0x2f8] sm:$0xff]
        %v749 = vld [vmem:[#allocation8 + $0x300] sm:$0xff]
        %v750 = vld [vmem:[#allocation8 + $0x308] sm:$0xff]
        %v751 = vld [vmem:[#allocation8 + $0x310] sm:$0xff]
        %v752 = vld [vmem:[#allocation8 + $0x318] sm:$0xff]
        %v753 = vld [vmem:[#allocation8 + $0x320] sm:$0xff]
        %v754 = vld [vmem:[#allocation8 + $0x328] sm:$0xff]
        %v755 = vld [vmem:[#allocation8 + $0x330] sm:$0xff]
        %v756 = vld [vmem:[#allocation8 + $0x338] sm:$0xff]
        %v757 = vld [vmem:[#allocation8 + $0x340] sm:$0xff]
        %v758 = vld [vmem:[#allocation8 + $0x348] sm:$0xff]
        %v759 = vld [vmem:[#allocation8 + $0x350] sm:$0xff]
        %v760 = vld [vmem:[#allocation8 + $0x358] sm:$0xff]
        %v761 = vld [vmem:[#allocation8 + $0x360] sm:$0xff]
        %v762 = vld [vmem:[#allocation8 + $0x368] sm:$0xff]
        %v763 = vld [vmem:[#allocation8 + $0x370] sm:$0xff]
        %v764 = vld [vmem:[#allocation8 + $0x378] sm:$0xff]
        %v765 = vld [vmem:[#allocation8 + $0x380] sm:$0xff]
        %v766 = vld [vmem:[#allocation8 + $0x388] sm:$0xff]
        %v767 = vld [vmem:[#allocation8 + $0x390] sm:$0xff]
        %v768 = vld [vmem:[#allocation8 + $0x398] sm:$0xff]
        %v769 = vld [vmem:[#allocation8 + $0x3a0] sm:$0xff]
        %v770 = vld [vmem:[#allocation8 + $0x3a8] sm:$0xff]
        %v771 = vld [vmem:[#allocation8 + $0x3b0] sm:$0xff]
        %v772 = vld [vmem:[#allocation8 + $0x3b8] sm:$0xff]
        %v773 = vld [vmem:[#allocation8 + $0x3c0] sm:$0xff]
        %v774 = vld [vmem:[#allocation8 + $0x3c8] sm:$0xff]
        %v775 = vld [vmem:[#allocation8 + $0x3d0] sm:$0xff]
        %v776 = vld [vmem:[#allocation8 + $0x3d8] sm:$0xff]
        %v777 = vld [vmem:[#allocation8 + $0x3e0] sm:$0xff]
        %v778 = vld [vmem:[#allocation8 + $0x3e8] sm:$0xff]
        %v779 = vld [vmem:[#allocation8 + $0x3f0] sm:$0xff]
        %v780 = vld [vmem:[#allocation8 + $0x3f8] sm:$0xff]
        %v781 = vld [vmem:[#allocation8 + $0x400] sm:$0xff]
        %v782 = vld [vmem:[#allocation8 + $0x408] sm:$0xff]
        %v783 = vld [vmem:[#allocation8 + $0x410] sm:$0xff]
        %v784 = vld [vmem:[#allocation8 + $0x418] sm:$0xff]
        %v785 = vld [vmem:[#allocation8 + $0x420] sm:$0xff]
        %v786 = vld [vmem:[#allocation8 + $0x428] sm:$0xff]
        %v787 = vld [vmem:[#allocation8 + $0x430] sm:$0xff]
        %v788 = vld [vmem:[#allocation8 + $0x438] sm:$0xff]
        %v789 = vld [vmem:[#allocation8 + $0x440] sm:$0xff]
        %v790 = vld [vmem:[#allocation8 + $0x448] sm:$0xff]
        %v791 = vld [vmem:[#allocation8 + $0x450] sm:$0xff]
        %v792 = vld [vmem:[#allocation8 + $0x458] sm:$0xff]
        %v793 = vld [vmem:[#allocation8 + $0x460] sm:$0xff]
        %v794 = vld [vmem:[#allocation8 + $0x468] sm:$0xff]
        %v795 = vld [vmem:[#allocation8 + $0x470] sm:$0xff]
        %v796 = vld [vmem:[#allocation8 + $0x478] sm:$0xff]
        %v797 = vld [vmem:[#allocation8 + $0x480] sm:$0xff]
        %v798 = vld [vmem:[#allocation8 + $0x488] sm:$0xff]
        %v799 = vld [vmem:[#allocation8 + $0x490] sm:$0xff]
        %v800 = vld [vmem:[#allocation8 + $0x498] sm:$0xff]
        %v801 = vld [vmem:[#allocation8 + $0x4a0] sm:$0xff]
        %v802 = vld [vmem:[#allocation8 + $0x4a8] sm:$0xff]
        %v803 = vld [vmem:[#allocation8 + $0x4b0] sm:$0xff]
        %v804 = vld [vmem:[#allocation8 + $0x4b8] sm:$0xff]
        %v805 = vld [vmem:[#allocation8 + $0x4c0] sm:$0xff]
        %v806 = vld [vmem:[#allocation8 + $0x4c8] sm:$0xff]
        %v807 = vld [vmem:[#allocation8 + $0x4d0] sm:$0xff]
        %v808 = vld [vmem:[#allocation8 + $0x4d8] sm:$0xff]
        %v809 = vld [vmem:[#allocation8 + $0x4e0] sm:$0xff]
        %v810 = vld [vmem:[#allocation8 + $0x4e8] sm:$0xff]
        %v811 = vld [vmem:[#allocation8 + $0x4f0] sm:$0xff]
        %v812 = vld [vmem:[#allocation8 + $0x4f8] sm:$0xff]
        %v813 = vld [vmem:[#allocation8 + $0x500] sm:$0xff]
        %v814 = vld [vmem:[#allocation8 + $0x508] sm:$0xff]
        %v815 = vld [vmem:[#allocation8 + $0x510] sm:$0xff]
        %v816 = vld [vmem:[#allocation8 + $0x518] sm:$0xff]
        %v817 = vld [vmem:[#allocation8 + $0x520] sm:$0xff]
        %v818 = vld [vmem:[#allocation8 + $0x528] sm:$0xff]
        %v819 = vld [vmem:[#allocation8 + $0x530] sm:$0xff]
        %v820 = vld [vmem:[#allocation8 + $0x538] sm:$0xff]
        %v821 = vld [vmem:[#allocation8 + $0x540] sm:$0xff]
        %v822 = vld [vmem:[#allocation8 + $0x548] sm:$0xff]
        %v823 = vld [vmem:[#allocation8 + $0x550] sm:$0xff]
        %v824 = vld [vmem:[#allocation8 + $0x558] sm:$0xff]
        %v825 = vld [vmem:[#allocation8 + $0x560] sm:$0xff]
        %v826 = vld [vmem:[#allocation8 + $0x568] sm:$0xff]
        %v827 = vld [vmem:[#allocation8 + $0x570] sm:$0xff]
        %v828 = vld [vmem:[#allocation8 + $0x578] sm:$0xff]
        %v829 = vld [vmem:[#allocation8 + $0x580] sm:$0xff]
        %v830 = vld [vmem:[#allocation8 + $0x588] sm:$0xff]
        %v831 = vld [vmem:[#allocation8 + $0x590] sm:$0xff]
        %v832 = vld [vmem:[#allocation8 + $0x598] sm:$0xff]
        %v833 = vld [vmem:[#allocation8 + $0x5a0] sm:$0xff]
        %v834 = vld [vmem:[#allocation8 + $0x5a8] sm:$0xff]
        %v835 = vld [vmem:[#allocation8 + $0x5b0] sm:$0xff]
        %v836 = vld [vmem:[#allocation8 + $0x5b8] sm:$0xff]
        %v837 = vld [vmem:[#allocation8 + $0x5c0] sm:$0xff]
        %v838 = vld [vmem:[#allocation8 + $0x5c8] sm:$0xff]
        %v839 = vld [vmem:[#allocation8 + $0x5d0] sm:$0xff]
        %v840 = vld [vmem:[#allocation8 + $0x5d8] sm:$0xff]
        %v841 = vld [vmem:[#allocation8 + $0x5e0] sm:$0xff]
        %v842 = vld [vmem:[#allocation8 + $0x5e8] sm:$0xff]
        %v843 = vld [vmem:[#allocation8 + $0x5f0] sm:$0xff]
        %v844 = vld [vmem:[#allocation8 + $0x5f8] sm:$0xff]
        %v845 = vld [vmem:[#allocation8 + $0x600] sm:$0xff]
        %v846 = vld [vmem:[#allocation8 + $0x608] sm:$0xff]
        %v847 = vld [vmem:[#allocation8 + $0x610] sm:$0xff]
        %v848 = vld [vmem:[#allocation8 + $0x618] sm:$0xff]
        %v849 = vld [vmem:[#allocation8 + $0x620] sm:$0xff]
        %v850 = vld [vmem:[#allocation8 + $0x628] sm:$0xff]
        %v851 = vld [vmem:[#allocation8 + $0x630] sm:$0xff]
        %v852 = vld [vmem:[#allocation8 + $0x638] sm:$0xff]
        %v853 = vld [vmem:[#allocation8 + $0x640] sm:$0xff]
        %v854 = vld [vmem:[#allocation8 + $0x648] sm:$0xff]
        %v855 = vld [vmem:[#allocation8 + $0x650] sm:$0xff]
        %v856 = vld [vmem:[#allocation8 + $0x658] sm:$0xff]
        %v857 = vld [vmem:[#allocation8 + $0x660] sm:$0xff]
        %v858 = vld [vmem:[#allocation8 + $0x668] sm:$0xff]
        %v859 = vld [vmem:[#allocation8 + $0x670] sm:$0xff]
        %v860 = vld [vmem:[#allocation8 + $0x678] sm:$0xff]
        %v861 = vld [vmem:[#allocation8 + $0x680] sm:$0xff]
        %v862 = vld [vmem:[#allocation8 + $0x688] sm:$0xff]
        %v863 = vld [vmem:[#allocation8 + $0x690] sm:$0xff]
        %v864 = vld [vmem:[#allocation8 + $0x698] sm:$0xff]
        %v865 = vld [vmem:[#allocation8 + $0x6a0] sm:$0xff]
        %v866 = vld [vmem:[#allocation8 + $0x6a8] sm:$0xff]
        %v867 = vld [vmem:[#allocation8 + $0x6b0] sm:$0xff]
        %v868 = vld [vmem:[#allocation8 + $0x6b8] sm:$0xff]
        %v869 = vld [vmem:[#allocation8 + $0x6c0] sm:$0xff]
        %v870 = vld [vmem:[#allocation8 + $0x6c8] sm:$0xff]
        %v871 = vld [vmem:[#allocation8 + $0x6d0] sm:$0xff]
        %v872 = vld [vmem:[#allocation8 + $0x6d8] sm:$0xff]
        %v873 = vld [vmem:[#allocation8 + $0x6e0] sm:$0xff]
        %v874 = vld [vmem:[#allocation8 + $0x6e8] sm:$0xff]
        %v875 = vld [vmem:[#allocation8 + $0x6f0] sm:$0xff]
        %v876 = vld [vmem:[#allocation8 + $0x6f8] sm:$0xff]
        %v877 = vld [vmem:[#allocation8 + $0x700] sm:$0xff]
        %v878 = vld [vmem:[#allocation8 + $0x708] sm:$0xff]
        %v879 = vld [vmem:[#allocation8 + $0x710] sm:$0xff]
        %v880 = vld [vmem:[#allocation8 + $0x718] sm:$0xff]
        %v881 = vld [vmem:[#allocation8 + $0x720] sm:$0xff]
        %v882 = vld [vmem:[#allocation8 + $0x728] sm:$0xff]
        %v883 = vld [vmem:[#allocation8 + $0x730] sm:$0xff]
        %v884 = vld [vmem:[#allocation8 + $0x738] sm:$0xff]
        %v885 = vld [vmem:[#allocation8 + $0x740] sm:$0xff]
        %v886 = vld [vmem:[#allocation8 + $0x748] sm:$0xff]
        %v887 = vld [vmem:[#allocation8 + $0x750] sm:$0xff]
        %v888 = vld [vmem:[#allocation8 + $0x758] sm:$0xff]
        %v889 = vld [vmem:[#allocation8 + $0x760] sm:$0xff]
        %v890 = vld [vmem:[#allocation8 + $0x768] sm:$0xff]
        %v891 = vld [vmem:[#allocation8 + $0x770] sm:$0xff]
        %v892 = vld [vmem:[#allocation8 + $0x778] sm:$0xff]
        %v893 = vld [vmem:[#allocation8 + $0x780] sm:$0xff]
        %v894 = vld [vmem:[#allocation8 + $0x788] sm:$0xff]
        %v895 = vld [vmem:[#allocation8 + $0x790] sm:$0xff]
        %v896 = vld [vmem:[#allocation8 + $0x798] sm:$0xff]
        %v897 = vld [vmem:[#allocation8 + $0x7a0] sm:$0xff]
        %v898 = vld [vmem:[#allocation8 + $0x7a8] sm:$0xff]
        %v899 = vld [vmem:[#allocation8 + $0x7b0] sm:$0xff]
        %v900 = vld [vmem:[#allocation8 + $0x7b8] sm:$0xff]
        %v901 = vld [vmem:[#allocation8 + $0x7c0] sm:$0xff]
        %v902 = vld [vmem:[#allocation8 + $0x7c8] sm:$0xff]
        %v903 = vld [vmem:[#allocation8 + $0x7d0] sm:$0xff]
        %v904 = vld [vmem:[#allocation8 + $0x7d8] sm:$0xff]
        %v905 = vld [vmem:[#allocation8 + $0x7e0] sm:$0xff]
        %v906 = vld [vmem:[#allocation8 + $0x7e8] sm:$0xff]
        %v907 = vld [vmem:[#allocation8 + $0x7f0] sm:$0xff]
        %v908 = vld [vmem:[#allocation8 + $0x7f8] sm:$0xff]
        %v909 = vld [vmem:[%s5] sm:$0xff]
        %v911 = vlaneseq
        %v912 = vshrl.u32 %v911, 7
        %v913 = vsub.s32 0, %v912
        %v914 = vrot.slane %v909, %v913
        %v915 = vlaneseq
        %v916 = vshrl.u32 %v915, 7
        %v917 = vsub.s32 1, %v916
        %v918 = vrot.slane %v909, %v917
        %v919 = vlaneseq
        %v920 = vshrl.u32 %v919, 7
        %v921 = vsub.s32 2, %v920
        %v922 = vrot.slane %v909, %v921
        %v923 = vlaneseq
        %v924 = vshrl.u32 %v923, 7
        %v925 = vsub.s32 3, %v924
        %v926 = vrot.slane %v909, %v925
        %v927 = vlaneseq
        %v928 = vshrl.u32 %v927, 7
        %v929 = vsub.s32 4, %v928
        %v930 = vrot.slane %v909, %v929
        %v931 = vlaneseq
        %v932 = vshrl.u32 %v931, 7
        %v933 = vsub.s32 5, %v932
        %v934 = vrot.slane %v909, %v933
        %v935 = vlaneseq
        %v936 = vshrl.u32 %v935, 7
        %v937 = vsub.s32 6, %v936
        %v938 = vrot.slane %v909, %v937
        %v939 = vlaneseq
        %v940 = vshrl.u32 %v939, 7
        %v941 = vsub.s32 7, %v940
        %v942 = vrot.slane %v909, %v941
        %v1207 = vunpack.c.l.b16 %v653
        %v1208 = vunpack.c.h.b16 %v653
        %v1209 = vunpack.c.l.b16 %v654
        %v1210 = vunpack.c.h.b16 %v654
        %v1211 = vunpack.c.l.b16 %v655
        %v1212 = vunpack.c.h.b16 %v655
        %v1213 = vunpack.c.l.b16 %v656
        %v1214 = vunpack.c.h.b16 %v656
        %v1215 = vunpack.c.l.b16 %v657
        %v1216 = vunpack.c.h.b16 %v657
        %v1217 = vunpack.c.l.b16 %v658
        %v1218 = vunpack.c.h.b16 %v658
        %v1219 = vunpack.c.l.b16 %v659
        %v1220 = vunpack.c.h.b16 %v659
        %v1221 = vunpack.c.l.b16 %v660
        %v1222 = vunpack.c.h.b16 %v660
        %v1223 = vunpack.c.l.b16 %v661
        %v1224 = vunpack.c.h.b16 %v661
        %v1225 = vunpack.c.l.b16 %v662
        %v1226 = vunpack.c.h.b16 %v662
        %v1227 = vunpack.c.l.b16 %v663
        %v1228 = vunpack.c.h.b16 %v663
        %v1229 = vunpack.c.l.b16 %v664
        %v1230 = vunpack.c.h.b16 %v664
        %v1231 = vunpack.c.l.b16 %v665
        %v1232 = vunpack.c.h.b16 %v665
        %v1233 = vunpack.c.l.b16 %v666
        %v1234 = vunpack.c.h.b16 %v666
        %v1235 = vunpack.c.l.b16 %v667
        %v1236 = vunpack.c.h.b16 %v667
        %v1237 = vunpack.c.l.b16 %v668
        %v1238 = vunpack.c.h.b16 %v668
        %v1239 = vunpack.c.l.b16 %v669
        %v1240 = vunpack.c.h.b16 %v669
        %v1241 = vunpack.c.l.b16 %v670
        %v1242 = vunpack.c.h.b16 %v670
        %v1243 = vunpack.c.l.b16 %v671
        %v1244 = vunpack.c.h.b16 %v671
        %v1245 = vunpack.c.l.b16 %v672
        %v1246 = vunpack.c.h.b16 %v672
        %v1247 = vunpack.c.l.b16 %v673
        %v1248 = vunpack.c.h.b16 %v673
        %v1249 = vunpack.c.l.b16 %v674
        %v1250 = vunpack.c.h.b16 %v674
        %v1251 = vunpack.c.l.b16 %v675
        %v1252 = vunpack.c.h.b16 %v675
        %v1253 = vunpack.c.l.b16 %v676
        %v1254 = vunpack.c.h.b16 %v676
        %v1255 = vunpack.c.l.b16 %v677
        %v1256 = vunpack.c.h.b16 %v677
        %v1257 = vunpack.c.l.b16 %v678
        %v1258 = vunpack.c.h.b16 %v678
        %v1259 = vunpack.c.l.b16 %v679
        %v1260 = vunpack.c.h.b16 %v679
        %v1261 = vunpack.c.l.b16 %v680
        %v1262 = vunpack.c.h.b16 %v680
        %v1263 = vunpack.c.l.b16 %v681
        %v1264 = vunpack.c.h.b16 %v681
        %v1265 = vunpack.c.l.b16 %v682
        %v1266 = vunpack.c.h.b16 %v682
        %v1267 = vunpack.c.l.b16 %v683
        %v1268 = vunpack.c.h.b16 %v683
        %v1269 = vunpack.c.l.b16 %v684
        %v1270 = vunpack.c.h.b16 %v684
        %v1271 = vunpack.c.l.b16 %v685
        %v1272 = vunpack.c.h.b16 %v685
        %v1273 = vunpack.c.l.b16 %v686
        %v1274 = vunpack.c.h.b16 %v686
        %v1275 = vunpack.c.l.b16 %v687
        %v1276 = vunpack.c.h.b16 %v687
        %v1277 = vunpack.c.l.b16 %v688
        %v1278 = vunpack.c.h.b16 %v688
        %v1279 = vunpack.c.l.b16 %v689
        %v1280 = vunpack.c.h.b16 %v689
        %v1281 = vunpack.c.l.b16 %v690
        %v1282 = vunpack.c.h.b16 %v690
        %v1283 = vunpack.c.l.b16 %v691
        %v1284 = vunpack.c.h.b16 %v691
        %v1285 = vunpack.c.l.b16 %v692
        %v1286 = vunpack.c.h.b16 %v692
        %v1287 = vunpack.c.l.b16 %v693
        %v1288 = vunpack.c.h.b16 %v693
        %v1289 = vunpack.c.l.b16 %v694
        %v1290 = vunpack.c.h.b16 %v694
        %v1291 = vunpack.c.l.b16 %v695
        %v1292 = vunpack.c.h.b16 %v695
        %v1293 = vunpack.c.l.b16 %v696
        %v1294 = vunpack.c.h.b16 %v696
        %v1295 = vunpack.c.l.b16 %v697
        %v1296 = vunpack.c.h.b16 %v697
        %v1297 = vunpack.c.l.b16 %v698
        %v1298 = vunpack.c.h.b16 %v698
        %v1299 = vunpack.c.l.b16 %v699
        %v1300 = vunpack.c.h.b16 %v699
        %v1301 = vunpack.c.l.b16 %v700
        %v1302 = vunpack.c.h.b16 %v700
        %v1303 = vunpack.c.l.b16 %v701
        %v1304 = vunpack.c.h.b16 %v701
        %v1305 = vunpack.c.l.b16 %v702
        %v1306 = vunpack.c.h.b16 %v702
        %v1307 = vunpack.c.l.b16 %v703
        %v1308 = vunpack.c.h.b16 %v703
        %v1309 = vunpack.c.l.b16 %v704
        %v1310 = vunpack.c.h.b16 %v704
        %v1311 = vunpack.c.l.b16 %v705
        %v1312 = vunpack.c.h.b16 %v705
        %v1313 = vunpack.c.l.b16 %v706
        %v1314 = vunpack.c.h.b16 %v706
        %v1315 = vunpack.c.l.b16 %v707
        %v1316 = vunpack.c.h.b16 %v707
        %v1317 = vunpack.c.l.b16 %v708
        %v1318 = vunpack.c.h.b16 %v708
        %v1319 = vunpack.c.l.b16 %v709
        %v1320 = vunpack.c.h.b16 %v709
        %v1321 = vunpack.c.l.b16 %v710
        %v1322 = vunpack.c.h.b16 %v710
        %v1323 = vunpack.c.l.b16 %v711
        %v1324 = vunpack.c.h.b16 %v711
        %v1325 = vunpack.c.l.b16 %v712
        %v1326 = vunpack.c.h.b16 %v712
        %v1327 = vunpack.c.l.b16 %v713
        %v1328 = vunpack.c.h.b16 %v713
        %v1329 = vunpack.c.l.b16 %v714
        %v1330 = vunpack.c.h.b16 %v714
        %v1331 = vunpack.c.l.b16 %v715
        %v1332 = vunpack.c.h.b16 %v715
        %v1333 = vunpack.c.l.b16 %v716
        %v1334 = vunpack.c.h.b16 %v716
        %v1335 = vunpack.c.l.b16 %v717
        %v1336 = vunpack.c.h.b16 %v717
        %v1337 = vunpack.c.l.b16 %v718
        %v1338 = vunpack.c.h.b16 %v718
        %v1339 = vunpack.c.l.b16 %v719
        %v1340 = vunpack.c.h.b16 %v719
        %v1341 = vunpack.c.l.b16 %v720
        %v1342 = vunpack.c.h.b16 %v720
        %v1343 = vunpack.c.l.b16 %v721
        %v1344 = vunpack.c.h.b16 %v721
        %v1345 = vunpack.c.l.b16 %v722
        %v1346 = vunpack.c.h.b16 %v722
        %v1347 = vunpack.c.l.b16 %v723
        %v1348 = vunpack.c.h.b16 %v723
        %v1349 = vunpack.c.l.b16 %v724
        %v1350 = vunpack.c.h.b16 %v724
        %v1351 = vunpack.c.l.b16 %v725
        %v1352 = vunpack.c.h.b16 %v725
        %v1353 = vunpack.c.l.b16 %v726
        %v1354 = vunpack.c.h.b16 %v726
        %v1355 = vunpack.c.l.b16 %v727
        %v1356 = vunpack.c.h.b16 %v727
        %v1357 = vunpack.c.l.b16 %v728
        %v1358 = vunpack.c.h.b16 %v728
        %v1359 = vunpack.c.l.b16 %v729
        %v1360 = vunpack.c.h.b16 %v729
        %v1361 = vunpack.c.l.b16 %v730
        %v1362 = vunpack.c.h.b16 %v730
        %v1363 = vunpack.c.l.b16 %v731
        %v1364 = vunpack.c.h.b16 %v731
        %v1365 = vunpack.c.l.b16 %v732
        %v1366 = vunpack.c.h.b16 %v732
        %v1367 = vunpack.c.l.b16 %v733
        %v1368 = vunpack.c.h.b16 %v733
        %v1369 = vunpack.c.l.b16 %v734
        %v1370 = vunpack.c.h.b16 %v734
        %v1371 = vunpack.c.l.b16 %v735
        %v1372 = vunpack.c.h.b16 %v735
        %v1373 = vunpack.c.l.b16 %v736
        %v1374 = vunpack.c.h.b16 %v736
        %v1375 = vunpack.c.l.b16 %v737
        %v1376 = vunpack.c.h.b16 %v737
        %v1377 = vunpack.c.l.b16 %v738
        %v1378 = vunpack.c.h.b16 %v738
        %v1379 = vunpack.c.l.b16 %v739
        %v1380 = vunpack.c.h.b16 %v739
        %v1381 = vunpack.c.l.b16 %v740
        %v1382 = vunpack.c.h.b16 %v740
        %v1383 = vunpack.c.l.b16 %v741
        %v1384 = vunpack.c.h.b16 %v741
        %v1385 = vunpack.c.l.b16 %v742
        %v1386 = vunpack.c.h.b16 %v742
        %v1387 = vunpack.c.l.b16 %v743
        %v1388 = vunpack.c.h.b16 %v743
        %v1389 = vunpack.c.l.b16 %v744
        %v1390 = vunpack.c.h.b16 %v744
        %v1391 = vunpack.c.l.b16 %v745
        %v1392 = vunpack.c.h.b16 %v745
        %v1393 = vunpack.c.l.b16 %v746
        %v1394 = vunpack.c.h.b16 %v746
        %v1395 = vunpack.c.l.b16 %v747
        %v1396 = vunpack.c.h.b16 %v747
        %v1397 = vunpack.c.l.b16 %v748
        %v1398 = vunpack.c.h.b16 %v748
        %v1399 = vunpack.c.l.b16 %v749
        %v1400 = vunpack.c.h.b16 %v749
        %v1401 = vunpack.c.l.b16 %v750
        %v1402 = vunpack.c.h.b16 %v750
        %v1403 = vunpack.c.l.b16 %v751
        %v1404 = vunpack.c.h.b16 %v751
        %v1405 = vunpack.c.l.b16 %v752
        %v1406 = vunpack.c.h.b16 %v752
        %v1407 = vunpack.c.l.b16 %v753
        %v1408 = vunpack.c.h.b16 %v753
        %v1409 = vunpack.c.l.b16 %v754
        %v1410 = vunpack.c.h.b16 %v754
        %v1411 = vunpack.c.l.b16 %v755
        %v1412 = vunpack.c.h.b16 %v755
        %v1413 = vunpack.c.l.b16 %v756
        %v1414 = vunpack.c.h.b16 %v756
        %v1415 = vunpack.c.l.b16 %v757
        %v1416 = vunpack.c.h.b16 %v757
        %v1417 = vunpack.c.l.b16 %v758
        %v1418 = vunpack.c.h.b16 %v758
        %v1419 = vunpack.c.l.b16 %v759
        %v1420 = vunpack.c.h.b16 %v759
        %v1421 = vunpack.c.l.b16 %v760
        %v1422 = vunpack.c.h.b16 %v760
        %v1423 = vunpack.c.l.b16 %v761
        %v1424 = vunpack.c.h.b16 %v761
        %v1425 = vunpack.c.l.b16 %v762
        %v1426 = vunpack.c.h.b16 %v762
        %v1427 = vunpack.c.l.b16 %v763
        %v1428 = vunpack.c.h.b16 %v763
        %v1429 = vunpack.c.l.b16 %v764
        %v1430 = vunpack.c.h.b16 %v764
        %v1431 = vunpack.c.l.b16 %v765
        %v1432 = vunpack.c.h.b16 %v765
        %v1433 = vunpack.c.l.b16 %v766
        %v1434 = vunpack.c.h.b16 %v766
        %v1435 = vunpack.c.l.b16 %v767
        %v1436 = vunpack.c.h.b16 %v767
        %v1437 = vunpack.c.l.b16 %v768
        %v1438 = vunpack.c.h.b16 %v768
        %v1439 = vunpack.c.l.b16 %v769
        %v1440 = vunpack.c.h.b16 %v769
        %v1441 = vunpack.c.l.b16 %v770
        %v1442 = vunpack.c.h.b16 %v770
        %v1443 = vunpack.c.l.b16 %v771
        %v1444 = vunpack.c.h.b16 %v771
        %v1445 = vunpack.c.l.b16 %v772
        %v1446 = vunpack.c.h.b16 %v772
        %v1447 = vunpack.c.l.b16 %v773
        %v1448 = vunpack.c.h.b16 %v773
        %v1449 = vunpack.c.l.b16 %v774
        %v1450 = vunpack.c.h.b16 %v774
        %v1451 = vunpack.c.l.b16 %v775
        %v1452 = vunpack.c.h.b16 %v775
        %v1453 = vunpack.c.l.b16 %v776
        %v1454 = vunpack.c.h.b16 %v776
        %v1455 = vunpack.c.l.b16 %v777
        %v1456 = vunpack.c.h.b16 %v777
        %v1457 = vunpack.c.l.b16 %v778
        %v1458 = vunpack.c.h.b16 %v778
        %v1459 = vunpack.c.l.b16 %v779
        %v1460 = vunpack.c.h.b16 %v779
        %v1461 = vunpack.c.l.b16 %v780
        %v1462 = vunpack.c.h.b16 %v780
        %v1463 = vunpack.c.l.b16 %v781
        %v1464 = vunpack.c.h.b16 %v781
        %v1465 = vunpack.c.l.b16 %v782
        %v1466 = vunpack.c.h.b16 %v782
        %v1467 = vunpack.c.l.b16 %v783
        %v1468 = vunpack.c.h.b16 %v783
        %v1469 = vunpack.c.l.b16 %v784
        %v1470 = vunpack.c.h.b16 %v784
        %v1471 = vunpack.c.l.b16 %v785
        %v1472 = vunpack.c.h.b16 %v785
        %v1473 = vunpack.c.l.b16 %v786
        %v1474 = vunpack.c.h.b16 %v786
        %v1475 = vunpack.c.l.b16 %v787
        %v1476 = vunpack.c.h.b16 %v787
        %v1477 = vunpack.c.l.b16 %v788
        %v1478 = vunpack.c.h.b16 %v788
        %v1479 = vunpack.c.l.b16 %v789
        %v1480 = vunpack.c.h.b16 %v789
        %v1481 = vunpack.c.l.b16 %v790
        %v1482 = vunpack.c.h.b16 %v790
        %v1483 = vunpack.c.l.b16 %v791
        %v1484 = vunpack.c.h.b16 %v791
        %v1485 = vunpack.c.l.b16 %v792
        %v1486 = vunpack.c.h.b16 %v792
        %v1487 = vunpack.c.l.b16 %v793
        %v1488 = vunpack.c.h.b16 %v793
        %v1489 = vunpack.c.l.b16 %v794
        %v1490 = vunpack.c.h.b16 %v794
        %v1491 = vunpack.c.l.b16 %v795
        %v1492 = vunpack.c.h.b16 %v795
        %v1493 = vunpack.c.l.b16 %v796
        %v1494 = vunpack.c.h.b16 %v796
        %v1495 = vunpack.c.l.b16 %v797
        %v1496 = vunpack.c.h.b16 %v797
        %v1497 = vunpack.c.l.b16 %v798
        %v1498 = vunpack.c.h.b16 %v798
        %v1499 = vunpack.c.l.b16 %v799
        %v1500 = vunpack.c.h.b16 %v799
        %v1501 = vunpack.c.l.b16 %v800
        %v1502 = vunpack.c.h.b16 %v800
        %v1503 = vunpack.c.l.b16 %v801
        %v1504 = vunpack.c.h.b16 %v801
        %v1505 = vunpack.c.l.b16 %v802
        %v1506 = vunpack.c.h.b16 %v802
        %v1507 = vunpack.c.l.b16 %v803
        %v1508 = vunpack.c.h.b16 %v803
        %v1509 = vunpack.c.l.b16 %v804
        %v1510 = vunpack.c.h.b16 %v804
        %v1511 = vunpack.c.l.b16 %v805
        %v1512 = vunpack.c.h.b16 %v805
        %v1513 = vunpack.c.l.b16 %v806
        %v1514 = vunpack.c.h.b16 %v806
        %v1515 = vunpack.c.l.b16 %v807
        %v1516 = vunpack.c.h.b16 %v807
        %v1517 = vunpack.c.l.b16 %v808
        %v1518 = vunpack.c.h.b16 %v808
        %v1519 = vunpack.c.l.b16 %v809
        %v1520 = vunpack.c.h.b16 %v809
        %v1521 = vunpack.c.l.b16 %v810
        %v1522 = vunpack.c.h.b16 %v810
        %v1523 = vunpack.c.l.b16 %v811
        %v1524 = vunpack.c.h.b16 %v811
        %v1525 = vunpack.c.l.b16 %v812
        %v1526 = vunpack.c.h.b16 %v812
        %v1527 = vunpack.c.l.b16 %v813
        %v1528 = vunpack.c.h.b16 %v813
        %v1529 = vunpack.c.l.b16 %v814
        %v1530 = vunpack.c.h.b16 %v814
        %v1531 = vunpack.c.l.b16 %v815
        %v1532 = vunpack.c.h.b16 %v815
        %v1533 = vunpack.c.l.b16 %v816
        %v1534 = vunpack.c.h.b16 %v816
        %v1535 = vunpack.c.l.b16 %v817
        %v1536 = vunpack.c.h.b16 %v817
        %v1537 = vunpack.c.l.b16 %v818
        %v1538 = vunpack.c.h.b16 %v818
        %v1539 = vunpack.c.l.b16 %v819
        %v1540 = vunpack.c.h.b16 %v819
        %v1541 = vunpack.c.l.b16 %v820
        %v1542 = vunpack.c.h.b16 %v820
        %v1543 = vunpack.c.l.b16 %v821
        %v1544 = vunpack.c.h.b16 %v821
        %v1545 = vunpack.c.l.b16 %v822
        %v1546 = vunpack.c.h.b16 %v822
        %v1547 = vunpack.c.l.b16 %v823
        %v1548 = vunpack.c.h.b16 %v823
        %v1549 = vunpack.c.l.b16 %v824
        %v1550 = vunpack.c.h.b16 %v824
        %v1551 = vunpack.c.l.b16 %v825
        %v1552 = vunpack.c.h.b16 %v825
        %v1553 = vunpack.c.l.b16 %v826
        %v1554 = vunpack.c.h.b16 %v826
        %v1555 = vunpack.c.l.b16 %v827
        %v1556 = vunpack.c.h.b16 %v827
        %v1557 = vunpack.c.l.b16 %v828
        %v1558 = vunpack.c.h.b16 %v828
        %v1559 = vunpack.c.l.b16 %v829
        %v1560 = vunpack.c.h.b16 %v829
        %v1561 = vunpack.c.l.b16 %v830
        %v1562 = vunpack.c.h.b16 %v830
        %v1563 = vunpack.c.l.b16 %v831
        %v1564 = vunpack.c.h.b16 %v831
        %v1565 = vunpack.c.l.b16 %v832
        %v1566 = vunpack.c.h.b16 %v832
        %v1567 = vunpack.c.l.b16 %v833
        %v1568 = vunpack.c.h.b16 %v833
        %v1569 = vunpack.c.l.b16 %v834
        %v1570 = vunpack.c.h.b16 %v834
        %v1571 = vunpack.c.l.b16 %v835
        %v1572 = vunpack.c.h.b16 %v835
        %v1573 = vunpack.c.l.b16 %v836
        %v1574 = vunpack.c.h.b16 %v836
        %v1575 = vunpack.c.l.b16 %v837
        %v1576 = vunpack.c.h.b16 %v837
        %v1577 = vunpack.c.l.b16 %v838
        %v1578 = vunpack.c.h.b16 %v838
        %v1579 = vunpack.c.l.b16 %v839
        %v1580 = vunpack.c.h.b16 %v839
        %v1581 = vunpack.c.l.b16 %v840
        %v1582 = vunpack.c.h.b16 %v840
        %v1583 = vunpack.c.l.b16 %v841
        %v1584 = vunpack.c.h.b16 %v841
        %v1585 = vunpack.c.l.b16 %v842
        %v1586 = vunpack.c.h.b16 %v842
        %v1587 = vunpack.c.l.b16 %v843
        %v1588 = vunpack.c.h.b16 %v843
        %v1589 = vunpack.c.l.b16 %v844
        %v1590 = vunpack.c.h.b16 %v844
        %v1591 = vunpack.c.l.b16 %v845
        %v1592 = vunpack.c.h.b16 %v845
        %v1593 = vunpack.c.l.b16 %v846
        %v1594 = vunpack.c.h.b16 %v846
        %v1595 = vunpack.c.l.b16 %v847
        %v1596 = vunpack.c.h.b16 %v847
        %v1597 = vunpack.c.l.b16 %v848
        %v1598 = vunpack.c.h.b16 %v848
        %v1599 = vunpack.c.l.b16 %v849
        %v1600 = vunpack.c.h.b16 %v849
        %v1601 = vunpack.c.l.b16 %v850
        %v1602 = vunpack.c.h.b16 %v850
        %v1603 = vunpack.c.l.b16 %v851
        %v1604 = vunpack.c.h.b16 %v851
        %v1605 = vunpack.c.l.b16 %v852
        %v1606 = vunpack.c.h.b16 %v852
        %v1607 = vunpack.c.l.b16 %v853
        %v1608 = vunpack.c.h.b16 %v853
        %v1609 = vunpack.c.l.b16 %v854
        %v1610 = vunpack.c.h.b16 %v854
        %v1611 = vunpack.c.l.b16 %v855
        %v1612 = vunpack.c.h.b16 %v855
        %v1613 = vunpack.c.l.b16 %v856
        %v1614 = vunpack.c.h.b16 %v856
        %v1615 = vunpack.c.l.b16 %v857
        %v1616 = vunpack.c.h.b16 %v857
        %v1617 = vunpack.c.l.b16 %v858
        %v1618 = vunpack.c.h.b16 %v858
        %v1619 = vunpack.c.l.b16 %v859
        %v1620 = vunpack.c.h.b16 %v859
        %v1621 = vunpack.c.l.b16 %v860
        %v1622 = vunpack.c.h.b16 %v860
        %v1623 = vunpack.c.l.b16 %v861
        %v1624 = vunpack.c.h.b16 %v861
        %v1625 = vunpack.c.l.b16 %v862
        %v1626 = vunpack.c.h.b16 %v862
        %v1627 = vunpack.c.l.b16 %v863
        %v1628 = vunpack.c.h.b16 %v863
        %v1629 = vunpack.c.l.b16 %v864
        %v1630 = vunpack.c.h.b16 %v864
        %v1631 = vunpack.c.l.b16 %v865
        %v1632 = vunpack.c.h.b16 %v865
        %v1633 = vunpack.c.l.b16 %v866
        %v1634 = vunpack.c.h.b16 %v866
        %v1635 = vunpack.c.l.b16 %v867
        %v1636 = vunpack.c.h.b16 %v867
        %v1637 = vunpack.c.l.b16 %v868
        %v1638 = vunpack.c.h.b16 %v868
        %v1639 = vunpack.c.l.b16 %v869
        %v1640 = vunpack.c.h.b16 %v869
        %v1641 = vunpack.c.l.b16 %v870
        %v1642 = vunpack.c.h.b16 %v870
        %v1643 = vunpack.c.l.b16 %v871
        %v1644 = vunpack.c.h.b16 %v871
        %v1645 = vunpack.c.l.b16 %v872
        %v1646 = vunpack.c.h.b16 %v872
        %v1647 = vunpack.c.l.b16 %v873
        %v1648 = vunpack.c.h.b16 %v873
        %v1649 = vunpack.c.l.b16 %v874
        %v1650 = vunpack.c.h.b16 %v874
        %v1651 = vunpack.c.l.b16 %v875
        %v1652 = vunpack.c.h.b16 %v875
        %v1653 = vunpack.c.l.b16 %v876
        %v1654 = vunpack.c.h.b16 %v876
        %v1655 = vunpack.c.l.b16 %v877
        %v1656 = vunpack.c.h.b16 %v877
        %v1657 = vunpack.c.l.b16 %v878
        %v1658 = vunpack.c.h.b16 %v878
        %v1659 = vunpack.c.l.b16 %v879
        %v1660 = vunpack.c.h.b16 %v879
        %v1661 = vunpack.c.l.b16 %v880
        %v1662 = vunpack.c.h.b16 %v880
        %v1663 = vunpack.c.l.b16 %v881
        %v1664 = vunpack.c.h.b16 %v881
        %v1665 = vunpack.c.l.b16 %v882
        %v1666 = vunpack.c.h.b16 %v882
        %v1667 = vunpack.c.l.b16 %v883
        %v1668 = vunpack.c.h.b16 %v883
        %v1669 = vunpack.c.l.b16 %v884
        %v1670 = vunpack.c.h.b16 %v884
        %v1671 = vunpack.c.l.b16 %v885
        %v1672 = vunpack.c.h.b16 %v885
        %v1673 = vunpack.c.l.b16 %v886
        %v1674 = vunpack.c.h.b16 %v886
        %v1675 = vunpack.c.l.b16 %v887
        %v1676 = vunpack.c.h.b16 %v887
        %v1677 = vunpack.c.l.b16 %v888
        %v1678 = vunpack.c.h.b16 %v888
        %v1679 = vunpack.c.l.b16 %v889
        %v1680 = vunpack.c.h.b16 %v889
        %v1681 = vunpack.c.l.b16 %v890
        %v1682 = vunpack.c.h.b16 %v890
        %v1683 = vunpack.c.l.b16 %v891
        %v1684 = vunpack.c.h.b16 %v891
        %v1685 = vunpack.c.l.b16 %v892
        %v1686 = vunpack.c.h.b16 %v892
        %v1687 = vunpack.c.l.b16 %v893
        %v1688 = vunpack.c.h.b16 %v893
        %v1689 = vunpack.c.l.b16 %v894
        %v1690 = vunpack.c.h.b16 %v894
        %v1691 = vunpack.c.l.b16 %v895
        %v1692 = vunpack.c.h.b16 %v895
        %v1693 = vunpack.c.l.b16 %v896
        %v1694 = vunpack.c.h.b16 %v896
        %v1695 = vunpack.c.l.b16 %v897
        %v1696 = vunpack.c.h.b16 %v897
        %v1697 = vunpack.c.l.b16 %v898
        %v1698 = vunpack.c.h.b16 %v898
        %v1699 = vunpack.c.l.b16 %v899
        %v1700 = vunpack.c.h.b16 %v899
        %v1701 = vunpack.c.l.b16 %v900
        %v1702 = vunpack.c.h.b16 %v900
        %v1703 = vunpack.c.l.b16 %v901
        %v1704 = vunpack.c.h.b16 %v901
        %v1705 = vunpack.c.l.b16 %v902
        %v1706 = vunpack.c.h.b16 %v902
        %v1707 = vunpack.c.l.b16 %v903
        %v1708 = vunpack.c.h.b16 %v903
        %v1709 = vunpack.c.l.b16 %v904
        %v1710 = vunpack.c.h.b16 %v904
        %v1711 = vunpack.c.l.b16 %v905
        %v1712 = vunpack.c.h.b16 %v905
        %v1713 = vunpack.c.l.b16 %v906
        %v1714 = vunpack.c.h.b16 %v906
        %v1715 = vunpack.c.l.b16 %v907
        %v1716 = vunpack.c.h.b16 %v907
        %v1717 = vunpack.c.l.b16 %v908
        %v1718 = vunpack.c.h.b16 %v908
        %v1719 = vpack.c.b16 %v1215, %v1207
        %v1720 = vpack.c.b16 %v1216, %v1208
        %v1721 = vpack.c.b16 %v1217, %v1209
        %v1722 = vpack.c.b16 %v1218, %v1210
        %v1723 = vpack.c.b16 %v1219, %v1211
        %v1724 = vpack.c.b16 %v1220, %v1212
        %v1725 = vpack.c.b16 %v1221, %v1213
        %v1726 = vpack.c.b16 %v1222, %v1214
        %v1727 = vpack.c.b16 %v1231, %v1223
        %v1728 = vpack.c.b16 %v1232, %v1224
        %v1729 = vpack.c.b16 %v1233, %v1225
        %v1730 = vpack.c.b16 %v1234, %v1226
        %v1731 = vpack.c.b16 %v1235, %v1227
        %v1732 = vpack.c.b16 %v1236, %v1228
        %v1733 = vpack.c.b16 %v1237, %v1229
        %v1734 = vpack.c.b16 %v1238, %v1230
        %v1735 = vpack.c.b16 %v1247, %v1239
        %v1736 = vpack.c.b16 %v1248, %v1240
        %v1737 = vpack.c.b16 %v1249, %v1241
        %v1738 = vpack.c.b16 %v1250, %v1242
        %v1739 = vpack.c.b16 %v1251, %v1243
        %v1740 = vpack.c.b16 %v1252, %v1244
        %v1741 = vpack.c.b16 %v1253, %v1245
        %v1742 = vpack.c.b16 %v1254, %v1246
        %v1743 = vpack.c.b16 %v1263, %v1255
        %v1744 = vpack.c.b16 %v1264, %v1256
        %v1745 = vpack.c.b16 %v1265, %v1257
        %v1746 = vpack.c.b16 %v1266, %v1258
        %v1747 = vpack.c.b16 %v1267, %v1259
        %v1748 = vpack.c.b16 %v1268, %v1260
        %v1749 = vpack.c.b16 %v1269, %v1261
        %v1750 = vpack.c.b16 %v1270, %v1262
        %v1751 = vpack.c.b16 %v1279, %v1271
        %v1752 = vpack.c.b16 %v1280, %v1272
        %v1753 = vpack.c.b16 %v1281, %v1273
        %v1754 = vpack.c.b16 %v1282, %v1274
        %v1755 = vpack.c.b16 %v1283, %v1275
        %v1756 = vpack.c.b16 %v1284, %v1276
        %v1757 = vpack.c.b16 %v1285, %v1277
        %v1758 = vpack.c.b16 %v1286, %v1278
        %v1759 = vpack.c.b16 %v1295, %v1287
        %v1760 = vpack.c.b16 %v1296, %v1288
        %v1761 = vpack.c.b16 %v1297, %v1289
        %v1762 = vpack.c.b16 %v1298, %v1290
        %v1763 = vpack.c.b16 %v1299, %v1291
        %v1764 = vpack.c.b16 %v1300, %v1292
        %v1765 = vpack.c.b16 %v1301, %v1293
        %v1766 = vpack.c.b16 %v1302, %v1294
        %v1767 = vpack.c.b16 %v1311, %v1303
        %v1768 = vpack.c.b16 %v1312, %v1304
        %v1769 = vpack.c.b16 %v1313, %v1305
        %v1770 = vpack.c.b16 %v1314, %v1306
        %v1771 = vpack.c.b16 %v1315, %v1307
        %v1772 = vpack.c.b16 %v1316, %v1308
        %v1773 = vpack.c.b16 %v1317, %v1309
        %v1774 = vpack.c.b16 %v1318, %v1310
        %v1775 = vpack.c.b16 %v1327, %v1319
        %v1776 = vpack.c.b16 %v1328, %v1320
        %v1777 = vpack.c.b16 %v1329, %v1321
        %v1778 = vpack.c.b16 %v1330, %v1322
        %v1779 = vpack.c.b16 %v1331, %v1323
        %v1780 = vpack.c.b16 %v1332, %v1324
        %v1781 = vpack.c.b16 %v1333, %v1325
        %v1782 = vpack.c.b16 %v1334, %v1326
        %v1783 = vpack.c.b16 %v1343, %v1335
        %v1784 = vpack.c.b16 %v1344, %v1336
        %v1785 = vpack.c.b16 %v1345, %v1337
        %v1786 = vpack.c.b16 %v1346, %v1338
        %v1787 = vpack.c.b16 %v1347, %v1339
        %v1788 = vpack.c.b16 %v1348, %v1340
        %v1789 = vpack.c.b16 %v1349, %v1341
        %v1790 = vpack.c.b16 %v1350, %v1342
        %v1791 = vpack.c.b16 %v1359, %v1351
        %v1792 = vpack.c.b16 %v1360, %v1352
        %v1793 = vpack.c.b16 %v1361, %v1353
        %v1794 = vpack.c.b16 %v1362, %v1354
        %v1795 = vpack.c.b16 %v1363, %v1355
        %v1796 = vpack.c.b16 %v1364, %v1356
        %v1797 = vpack.c.b16 %v1365, %v1357
        %v1798 = vpack.c.b16 %v1366, %v1358
        %v1799 = vpack.c.b16 %v1375, %v1367
        %v1800 = vpack.c.b16 %v1376, %v1368
        %v1801 = vpack.c.b16 %v1377, %v1369
        %v1802 = vpack.c.b16 %v1378, %v1370
        %v1803 = vpack.c.b16 %v1379, %v1371
        %v1804 = vpack.c.b16 %v1380, %v1372
        %v1805 = vpack.c.b16 %v1381, %v1373
        %v1806 = vpack.c.b16 %v1382, %v1374
        %v1807 = vpack.c.b16 %v1391, %v1383
        %v1808 = vpack.c.b16 %v1392, %v1384
        %v1809 = vpack.c.b16 %v1393, %v1385
        %v1810 = vpack.c.b16 %v1394, %v1386
        %v1811 = vpack.c.b16 %v1395, %v1387
        %v1812 = vpack.c.b16 %v1396, %v1388
        %v1813 = vpack.c.b16 %v1397, %v1389
        %v1814 = vpack.c.b16 %v1398, %v1390
        %v1815 = vpack.c.b16 %v1407, %v1399
        %v1816 = vpack.c.b16 %v1408, %v1400
        %v1817 = vpack.c.b16 %v1409, %v1401
        %v1818 = vpack.c.b16 %v1410, %v1402
        %v1819 = vpack.c.b16 %v1411, %v1403
        %v1820 = vpack.c.b16 %v1412, %v1404
        %v1821 = vpack.c.b16 %v1413, %v1405
        %v1822 = vpack.c.b16 %v1414, %v1406
        %v1823 = vpack.c.b16 %v1423, %v1415
        %v1824 = vpack.c.b16 %v1424, %v1416
        %v1825 = vpack.c.b16 %v1425, %v1417
        %v1826 = vpack.c.b16 %v1426, %v1418
        %v1827 = vpack.c.b16 %v1427, %v1419
        %v1828 = vpack.c.b16 %v1428, %v1420
        %v1829 = vpack.c.b16 %v1429, %v1421
        %v1830 = vpack.c.b16 %v1430, %v1422
        %v1831 = vpack.c.b16 %v1439, %v1431
        %v1832 = vpack.c.b16 %v1440, %v1432
        %v1833 = vpack.c.b16 %v1441, %v1433
        %v1834 = vpack.c.b16 %v1442, %v1434
        %v1835 = vpack.c.b16 %v1443, %v1435
        %v1836 = vpack.c.b16 %v1444, %v1436
        %v1837 = vpack.c.b16 %v1445, %v1437
        %v1838 = vpack.c.b16 %v1446, %v1438
        %v1839 = vpack.c.b16 %v1455, %v1447
        %v1840 = vpack.c.b16 %v1456, %v1448
        %v1841 = vpack.c.b16 %v1457, %v1449
        %v1842 = vpack.c.b16 %v1458, %v1450
        %v1843 = vpack.c.b16 %v1459, %v1451
        %v1844 = vpack.c.b16 %v1460, %v1452
        %v1845 = vpack.c.b16 %v1461, %v1453
        %v1846 = vpack.c.b16 %v1462, %v1454
        %v1847 = vpack.c.b16 %v1471, %v1463
        %v1848 = vpack.c.b16 %v1472, %v1464
        %v1849 = vpack.c.b16 %v1473, %v1465
        %v1850 = vpack.c.b16 %v1474, %v1466
        %v1851 = vpack.c.b16 %v1475, %v1467
        %v1852 = vpack.c.b16 %v1476, %v1468
        %v1853 = vpack.c.b16 %v1477, %v1469
        %v1854 = vpack.c.b16 %v1478, %v1470
        %v1855 = vpack.c.b16 %v1487, %v1479
        %v1856 = vpack.c.b16 %v1488, %v1480
        %v1857 = vpack.c.b16 %v1489, %v1481
        %v1858 = vpack.c.b16 %v1490, %v1482
        %v1859 = vpack.c.b16 %v1491, %v1483
        %v1860 = vpack.c.b16 %v1492, %v1484
        %v1861 = vpack.c.b16 %v1493, %v1485
        %v1862 = vpack.c.b16 %v1494, %v1486
        %v1863 = vpack.c.b16 %v1503, %v1495
        %v1864 = vpack.c.b16 %v1504, %v1496
        %v1865 = vpack.c.b16 %v1505, %v1497
        %v1866 = vpack.c.b16 %v1506, %v1498
        %v1867 = vpack.c.b16 %v1507, %v1499
        %v1868 = vpack.c.b16 %v1508, %v1500
        %v1869 = vpack.c.b16 %v1509, %v1501
        %v1870 = vpack.c.b16 %v1510, %v1502
        %v1871 = vpack.c.b16 %v1519, %v1511
        %v1872 = vpack.c.b16 %v1520, %v1512
        %v1873 = vpack.c.b16 %v1521, %v1513
        %v1874 = vpack.c.b16 %v1522, %v1514
        %v1875 = vpack.c.b16 %v1523, %v1515
        %v1876 = vpack.c.b16 %v1524, %v1516
        %v1877 = vpack.c.b16 %v1525, %v1517
        %v1878 = vpack.c.b16 %v1526, %v1518
        %v1879 = vpack.c.b16 %v1535, %v1527
        %v1880 = vpack.c.b16 %v1536, %v1528
        %v1881 = vpack.c.b16 %v1537, %v1529
        %v1882 = vpack.c.b16 %v1538, %v1530
        %v1883 = vpack.c.b16 %v1539, %v1531
        %v1884 = vpack.c.b16 %v1540, %v1532
        %v1885 = vpack.c.b16 %v1541, %v1533
        %v1886 = vpack.c.b16 %v1542, %v1534
        %v1887 = vpack.c.b16 %v1551, %v1543
        %v1888 = vpack.c.b16 %v1552, %v1544
        %v1889 = vpack.c.b16 %v1553, %v1545
        %v1890 = vpack.c.b16 %v1554, %v1546
        %v1891 = vpack.c.b16 %v1555, %v1547
        %v1892 = vpack.c.b16 %v1556, %v1548
        %v1893 = vpack.c.b16 %v1557, %v1549
        %v1894 = vpack.c.b16 %v1558, %v1550
        %v1895 = vpack.c.b16 %v1567, %v1559
        %v1896 = vpack.c.b16 %v1568, %v1560
        %v1897 = vpack.c.b16 %v1569, %v1561
        %v1898 = vpack.c.b16 %v1570, %v1562
        %v1899 = vpack.c.b16 %v1571, %v1563
        %v1900 = vpack.c.b16 %v1572, %v1564
        %v1901 = vpack.c.b16 %v1573, %v1565
        %v1902 = vpack.c.b16 %v1574, %v1566
        %v1903 = vpack.c.b16 %v1583, %v1575
        %v1904 = vpack.c.b16 %v1584, %v1576
        %v1905 = vpack.c.b16 %v1585, %v1577
        %v1906 = vpack.c.b16 %v1586, %v1578
        %v1907 = vpack.c.b16 %v1587, %v1579
        %v1908 = vpack.c.b16 %v1588, %v1580
        %v1909 = vpack.c.b16 %v1589, %v1581
        %v1910 = vpack.c.b16 %v1590, %v1582
        %v1911 = vpack.c.b16 %v1599, %v1591
        %v1912 = vpack.c.b16 %v1600, %v1592
        %v1913 = vpack.c.b16 %v1601, %v1593
        %v1914 = vpack.c.b16 %v1602, %v1594
        %v1915 = vpack.c.b16 %v1603, %v1595
        %v1916 = vpack.c.b16 %v1604, %v1596
        %v1917 = vpack.c.b16 %v1605, %v1597
        %v1918 = vpack.c.b16 %v1606, %v1598
        %v1919 = vpack.c.b16 %v1615, %v1607
        %v1920 = vpack.c.b16 %v1616, %v1608
        %v1921 = vpack.c.b16 %v1617, %v1609
        %v1922 = vpack.c.b16 %v1618, %v1610
        %v1923 = vpack.c.b16 %v1619, %v1611
        %v1924 = vpack.c.b16 %v1620, %v1612
        %v1925 = vpack.c.b16 %v1621, %v1613
        %v1926 = vpack.c.b16 %v1622, %v1614
        %v1927 = vpack.c.b16 %v1631, %v1623
        %v1928 = vpack.c.b16 %v1632, %v1624
        %v1929 = vpack.c.b16 %v1633, %v1625
        %v1930 = vpack.c.b16 %v1634, %v1626
        %v1931 = vpack.c.b16 %v1635, %v1627
        %v1932 = vpack.c.b16 %v1636, %v1628
        %v1933 = vpack.c.b16 %v1637, %v1629
        %v1934 = vpack.c.b16 %v1638, %v1630
        %v1935 = vpack.c.b16 %v1647, %v1639
        %v1936 = vpack.c.b16 %v1648, %v1640
        %v1937 = vpack.c.b16 %v1649, %v1641
        %v1938 = vpack.c.b16 %v1650, %v1642
        %v1939 = vpack.c.b16 %v1651, %v1643
        %v1940 = vpack.c.b16 %v1652, %v1644
        %v1941 = vpack.c.b16 %v1653, %v1645
        %v1942 = vpack.c.b16 %v1654, %v1646
        %v1943 = vpack.c.b16 %v1663, %v1655
        %v1944 = vpack.c.b16 %v1664, %v1656
        %v1945 = vpack.c.b16 %v1665, %v1657
        %v1946 = vpack.c.b16 %v1666, %v1658
        %v1947 = vpack.c.b16 %v1667, %v1659
        %v1948 = vpack.c.b16 %v1668, %v1660
        %v1949 = vpack.c.b16 %v1669, %v1661
        %v1950 = vpack.c.b16 %v1670, %v1662
        %v1951 = vpack.c.b16 %v1679, %v1671
        %v1952 = vpack.c.b16 %v1680, %v1672
        %v1953 = vpack.c.b16 %v1681, %v1673
        %v1954 = vpack.c.b16 %v1682, %v1674
        %v1955 = vpack.c.b16 %v1683, %v1675
        %v1956 = vpack.c.b16 %v1684, %v1676
        %v1957 = vpack.c.b16 %v1685, %v1677
        %v1958 = vpack.c.b16 %v1686, %v1678
        %v1959 = vpack.c.b16 %v1695, %v1687
        %v1960 = vpack.c.b16 %v1696, %v1688
        %v1961 = vpack.c.b16 %v1697, %v1689
        %v1962 = vpack.c.b16 %v1698, %v1690
        %v1963 = vpack.c.b16 %v1699, %v1691
        %v1964 = vpack.c.b16 %v1700, %v1692
        %v1965 = vpack.c.b16 %v1701, %v1693
        %v1966 = vpack.c.b16 %v1702, %v1694
        %v1967 = vpack.c.b16 %v1711, %v1703
        %v1968 = vpack.c.b16 %v1712, %v1704
        %v1969 = vpack.c.b16 %v1713, %v1705
        %v1970 = vpack.c.b16 %v1714, %v1706
        %v1971 = vpack.c.b16 %v1715, %v1707
        %v1972 = vpack.c.b16 %v1716, %v1708
        %v1973 = vpack.c.b16 %v1717, %v1709
        %v1974 = vpack.c.b16 %v1718, %v1710
        %2231 = vmatprep.subr.bf16.mxu0 %v1776
        %2232 = vmatpush1.bf16.msra.mxu0 %v1775
        %2233 = vmatprep.subr.bf16.mxu0 %v1768
        %2234 = vmatpush1.bf16.msra.mxu0 %v1767
        %2235 = vmatprep.subr.bf16.mxu0 %v1760
        %2236 = vmatpush1.bf16.msra.mxu0 %v1759
        %2237 = vmatprep.subr.bf16.mxu0 %v1752
        %2238 = vmatpush1.bf16.msra.mxu0 %v1751
        %2239 = vmatprep.subr.bf16.mxu0 %v1744
        %2240 = vmatpush1.bf16.msra.mxu0 %v1743
        %2241 = vmatprep.subr.bf16.mxu0 %v1736
        %2242 = vmatpush1.bf16.msra.mxu0 %v1735
        %2243 = vmatprep.subr.bf16.mxu0 %v1728
        %2244 = vmatpush1.bf16.msra.mxu0 %v1727
        %2245 = vmatprep.subr.bf16.mxu0 %v1720
        %2246 = vmatpush1.bf16.msra.mxu0 %v1719
        %2247 = vmatprep.subr.bf16.mxu0 %v1840
        %2248 = vmatpush2.bf16.msra.mxu0 %v1839
        %2249 = vmatprep.subr.bf16.mxu0 %v1832
        %2250 = vmatpush2.bf16.msra.mxu0 %v1831
        %2251 = vmatprep.subr.bf16.mxu0 %v1824
        %2252 = vmatpush2.bf16.msra.mxu0 %v1823
        %2253 = vmatprep.subr.bf16.mxu0 %v1816
        %2254 = vmatpush2.bf16.msra.mxu0 %v1815
        %2255 = vmatprep.subr.bf16.mxu0 %v1808
        %2256 = vmatpush2.bf16.msra.mxu0 %v1807
        %2257 = vmatprep.subr.bf16.mxu0 %v1800
        %2258 = vmatpush2.bf16.msra.mxu0 %v1799
        %2259 = vmatprep.subr.bf16.mxu0 %v1792
        %2260 = vmatpush2.bf16.msra.mxu0 %v1791
        %2261 = vmatprep.subr.bf16.mxu0 %v1784
        %2262 = vmatpush2.bf16.msra.mxu0 %v1783
        %2263 = vmatprep.mubr.bf16.mxu0 %v650
        %2264 = vmatmul.mubr.bf16.gmra.mxu0 %v649
        %v2265 = vpop.f32.mrf.mxu0
        %v2266 = vadd.f32 %v914, %v2265
        %v2267 = vpop.f32.mrf.mxu0
        %v2268 = vadd.f32 %v918, %v2267
        %v2269 = vpop.f32.mrf.mxu0
        %v2270 = vpop.f32.mrf.mxu0
        %2271 = vdwg.mxu0
        %2272 = vmatprep.subr.bf16.mxu0 %v1904
        %2273 = vmatpush1.bf16.msra.mxu0 %v1903
        %2274 = vmatprep.subr.bf16.mxu0 %v1896
        %2275 = vmatpush1.bf16.msra.mxu0 %v1895
        %2276 = vmatprep.subr.bf16.mxu0 %v1888
        %2277 = vmatpush1.bf16.msra.mxu0 %v1887
        %2278 = vmatprep.subr.bf16.mxu0 %v1880
        %2279 = vmatpush1.bf16.msra.mxu0 %v1879
        %2280 = vmatprep.subr.bf16.mxu0 %v1872
        %2281 = vmatpush1.bf16.msra.mxu0 %v1871
        %2282 = vmatprep.subr.bf16.mxu0 %v1864
        %2283 = vmatpush1.bf16.msra.mxu0 %v1863
        %2284 = vmatprep.subr.bf16.mxu0 %v1856
        %2285 = vmatpush1.bf16.msra.mxu0 %v1855
        %2286 = vmatprep.subr.bf16.mxu0 %v1848
        %2287 = vmatpush1.bf16.msra.mxu0 %v1847
        %2288 = vmatprep.subr.bf16.mxu0 %v1968
        %2289 = vmatpush2.bf16.msra.mxu0 %v1967
        %2290 = vmatprep.subr.bf16.mxu0 %v1960
        %2291 = vmatpush2.bf16.msra.mxu0 %v1959
        %2292 = vmatprep.subr.bf16.mxu0 %v1952
        %2293 = vmatpush2.bf16.msra.mxu0 %v1951
        %2294 = vmatprep.subr.bf16.mxu0 %v1944
        %2295 = vmatpush2.bf16.msra.mxu0 %v1943
        %2296 = vmatprep.subr.bf16.mxu0 %v1936
        %2297 = vmatpush2.bf16.msra.mxu0 %v1935
        %2298 = vmatprep.subr.bf16.mxu0 %v1928
        %2299 = vmatpush2.bf16.msra.mxu0 %v1927
        %2300 = vmatprep.subr.bf16.mxu0 %v1920
        %2301 = vmatpush2.bf16.msra.mxu0 %v1919
        %2302 = vmatprep.subr.bf16.mxu0 %v1912
        %2303 = vmatpush2.bf16.msra.mxu0 %v1911
        %2304 = vmatprep.mubr.bf16.mxu0 %v652
        %2305 = vmatmul.mubr.bf16.gmra.mxu0 %v651
        %v2306 = vpop.f32.mrf.mxu0
        %v2307 = vadd.f32 %v2266, %v2306
        %v2308 = vpop.f32.mrf.mxu0
        %v2309 = vadd.f32 %v2268, %v2308
        %v2310 = vpop.f32.mrf.mxu0
        %v2311 = vpop.f32.mrf.mxu0
        %2312 = vdwg.mxu0
        %2313 = vmatprep.subr.bf16.mxu0 %v1778
        %2314 = vmatpush1.bf16.msra.mxu0 %v1777
        %2315 = vmatprep.subr.bf16.mxu0 %v1770
        %2316 = vmatpush1.bf16.msra.mxu0 %v1769
        %2317 = vmatprep.subr.bf16.mxu0 %v1762
        %2318 = vmatpush1.bf16.msra.mxu0 %v1761
        %2319 = vmatprep.subr.bf16.mxu0 %v1754
        %2320 = vmatpush1.bf16.msra.mxu0 %v1753
        %2321 = vmatprep.subr.bf16.mxu0 %v1746
        %2322 = vmatpush1.bf16.msra.mxu0 %v1745
        %2323 = vmatprep.subr.bf16.mxu0 %v1738
        %2324 = vmatpush1.bf16.msra.mxu0 %v1737
        %2325 = vmatprep.subr.bf16.mxu0 %v1730
        %2326 = vmatpush1.bf16.msra.mxu0 %v1729
        %2327 = vmatprep.subr.bf16.mxu0 %v1722
        %2328 = vmatpush1.bf16.msra.mxu0 %v1721
        %2329 = vmatprep.subr.bf16.mxu0 %v1842
        %2330 = vmatpush2.bf16.msra.mxu0 %v1841
        %2331 = vmatprep.subr.bf16.mxu0 %v1834
        %2332 = vmatpush2.bf16.msra.mxu0 %v1833
        %2333 = vmatprep.subr.bf16.mxu0 %v1826
        %2334 = vmatpush2.bf16.msra.mxu0 %v1825
        %2335 = vmatprep.subr.bf16.mxu0 %v1818
        %2336 = vmatpush2.bf16.msra.mxu0 %v1817
        %2337 = vmatprep.subr.bf16.mxu0 %v1810
        %2338 = vmatpush2.bf16.msra.mxu0 %v1809
        %2339 = vmatprep.subr.bf16.mxu0 %v1802
        %2340 = vmatpush2.bf16.msra.mxu0 %v1801
        %2341 = vmatprep.subr.bf16.mxu0 %v1794
        %2342 = vmatpush2.bf16.msra.mxu0 %v1793
        %2343 = vmatprep.subr.bf16.mxu0 %v1786
        %2344 = vmatpush2.bf16.msra.mxu0 %v1785
        %2345 = vmatprep.mubr.bf16.mxu0 %v650
        %2346 = vmatmul.mubr.bf16.gmra.mxu0 %v649
        %v2347 = vpop.f32.mrf.mxu0
        %v2348 = vadd.f32 %v922, %v2347
        %v2349 = vpop.f32.mrf.mxu0
        %v2350 = vadd.f32 %v926, %v2349
        %v2351 = vpop.f32.mrf.mxu0
        %v2352 = vpop.f32.mrf.mxu0
        %2353 = vdwg.mxu0
        %2354 = vmatprep.subr.bf16.mxu0 %v1906
        %2355 = vmatpush1.bf16.msra.mxu0 %v1905
        %2356 = vmatprep.subr.bf16.mxu0 %v1898
        %2357 = vmatpush1.bf16.msra.mxu0 %v1897
        %2358 = vmatprep.subr.bf16.mxu0 %v1890
        %2359 = vmatpush1.bf16.msra.mxu0 %v1889
        %2360 = vmatprep.subr.bf16.mxu0 %v1882
        %2361 = vmatpush1.bf16.msra.mxu0 %v1881
        %2362 = vmatprep.subr.bf16.mxu0 %v1874
        %2363 = vmatpush1.bf16.msra.mxu0 %v1873
        %2364 = vmatprep.subr.bf16.mxu0 %v1866
        %2365 = vmatpush1.bf16.msra.mxu0 %v1865
        %2366 = vmatprep.subr.bf16.mxu0 %v1858
        %2367 = vmatpush1.bf16.msra.mxu0 %v1857
        %2368 = vmatprep.subr.bf16.mxu0 %v1850
        %2369 = vmatpush1.bf16.msra.mxu0 %v1849
        %2370 = vmatprep.subr.bf16.mxu0 %v1970
        %2371 = vmatpush2.bf16.msra.mxu0 %v1969
        %2372 = vmatprep.subr.bf16.mxu0 %v1962
        %2373 = vmatpush2.bf16.msra.mxu0 %v1961
        %2374 = vmatprep.subr.bf16.mxu0 %v1954
        %2375 = vmatpush2.bf16.msra.mxu0 %v1953
        %2376 = vmatprep.subr.bf16.mxu0 %v1946
        %2377 = vmatpush2.bf16.msra.mxu0 %v1945
        %2378 = vmatprep.subr.bf16.mxu0 %v1938
        %2379 = vmatpush2.bf16.msra.mxu0 %v1937
        %2380 = vmatprep.subr.bf16.mxu0 %v1930
        %2381 = vmatpush2.bf16.msra.mxu0 %v1929
        %2382 = vmatprep.subr.bf16.mxu0 %v1922
        %2383 = vmatpush2.bf16.msra.mxu0 %v1921
        %2384 = vmatprep.subr.bf16.mxu0 %v1914
        %2385 = vmatpush2.bf16.msra.mxu0 %v1913
        %2386 = vmatprep.mubr.bf16.mxu0 %v652
        %2387 = vmatmul.mubr.bf16.gmra.mxu0 %v651
        %v2388 = vpop.f32.mrf.mxu0
        %v2389 = vadd.f32 %v2348, %v2388
        %v2390 = vpop.f32.mrf.mxu0
        %v2391 = vadd.f32 %v2350, %v2390
        %v2392 = vpop.f32.mrf.mxu0
        %v2393 = vpop.f32.mrf.mxu0
        %2394 = vdwg.mxu0
        %2395 = vmatprep.subr.bf16.mxu0 %v1780
        %2396 = vmatpush1.bf16.msra.mxu0 %v1779
        %2397 = vmatprep.subr.bf16.mxu0 %v1772
        %2398 = vmatpush1.bf16.msra.mxu0 %v1771
        %2399 = vmatprep.subr.bf16.mxu0 %v1764
        %2400 = vmatpush1.bf16.msra.mxu0 %v1763
        %2401 = vmatprep.subr.bf16.mxu0 %v1756
        %2402 = vmatpush1.bf16.msra.mxu0 %v1755
        %2403 = vmatprep.subr.bf16.mxu0 %v1748
        %2404 = vmatpush1.bf16.msra.mxu0 %v1747
        %2405 = vmatprep.subr.bf16.mxu0 %v1740
        %2406 = vmatpush1.bf16.msra.mxu0 %v1739
        %2407 = vmatprep.subr.bf16.mxu0 %v1732
        %2408 = vmatpush1.bf16.msra.mxu0 %v1731
        %2409 = vmatprep.subr.bf16.mxu0 %v1724
        %2410 = vmatpush1.bf16.msra.mxu0 %v1723
        %2411 = vmatprep.subr.bf16.mxu0 %v1844
        %2412 = vmatpush2.bf16.msra.mxu0 %v1843
        %2413 = vmatprep.subr.bf16.mxu0 %v1836
        %2414 = vmatpush2.bf16.msra.mxu0 %v1835
        %2415 = vmatprep.subr.bf16.mxu0 %v1828
        %2416 = vmatpush2.bf16.msra.mxu0 %v1827
        %2417 = vmatprep.subr.bf16.mxu0 %v1820
        %2418 = vmatpush2.bf16.msra.mxu0 %v1819
        %2419 = vmatprep.subr.bf16.mxu0 %v1812
        %2420 = vmatpush2.bf16.msra.mxu0 %v1811
        %2421 = vmatprep.subr.bf16.mxu0 %v1804
        %2422 = vmatpush2.bf16.msra.mxu0 %v1803
        %2423 = vmatprep.subr.bf16.mxu0 %v1796
        %2424 = vmatpush2.bf16.msra.mxu0 %v1795
        %2425 = vmatprep.subr.bf16.mxu0 %v1788
        %2426 = vmatpush2.bf16.msra.mxu0 %v1787
        %2427 = vmatprep.mubr.bf16.mxu0 %v650
        %2428 = vmatmul.mubr.bf16.gmra.mxu0 %v649
        %v2429 = vpop.f32.mrf.mxu0
        %v2430 = vadd.f32 %v930, %v2429
        %v2431 = vpop.f32.mrf.mxu0
        %v2432 = vadd.f32 %v934, %v2431
        %v2433 = vpop.f32.mrf.mxu0
        %v2434 = vpop.f32.mrf.mxu0
        %2435 = vdwg.mxu0
        %2436 = vmatprep.subr.bf16.mxu0 %v1908
        %2437 = vmatpush1.bf16.msra.mxu0 %v1907
        %2438 = vmatprep.subr.bf16.mxu0 %v1900
        %2439 = vmatpush1.bf16.msra.mxu0 %v1899
        %2440 = vmatprep.subr.bf16.mxu0 %v1892
        %2441 = vmatpush1.bf16.msra.mxu0 %v1891
        %2442 = vmatprep.subr.bf16.mxu0 %v1884
        %2443 = vmatpush1.bf16.msra.mxu0 %v1883
        %2444 = vmatprep.subr.bf16.mxu0 %v1876
        %2445 = vmatpush1.bf16.msra.mxu0 %v1875
        %2446 = vmatprep.subr.bf16.mxu0 %v1868
        %2447 = vmatpush1.bf16.msra.mxu0 %v1867
        %2448 = vmatprep.subr.bf16.mxu0 %v1860
        %2449 = vmatpush1.bf16.msra.mxu0 %v1859
        %2450 = vmatprep.subr.bf16.mxu0 %v1852
        %2451 = vmatpush1.bf16.msra.mxu0 %v1851
        %2452 = vmatprep.subr.bf16.mxu0 %v1972
        %2453 = vmatpush2.bf16.msra.mxu0 %v1971
        %2454 = vmatprep.subr.bf16.mxu0 %v1964
        %2455 = vmatpush2.bf16.msra.mxu0 %v1963
        %2456 = vmatprep.subr.bf16.mxu0 %v1956
        %2457 = vmatpush2.bf16.msra.mxu0 %v1955
        %2458 = vmatprep.subr.bf16.mxu0 %v1948
        %2459 = vmatpush2.bf16.msra.mxu0 %v1947
        %2460 = vmatprep.subr.bf16.mxu0 %v1940
        %2461 = vmatpush2.bf16.msra.mxu0 %v1939
        %2462 = vmatprep.subr.bf16.mxu0 %v1932
        %2463 = vmatpush2.bf16.msra.mxu0 %v1931
        %2464 = vmatprep.subr.bf16.mxu0 %v1924
        %2465 = vmatpush2.bf16.msra.mxu0 %v1923
        %2466 = vmatprep.subr.bf16.mxu0 %v1916
        %2467 = vmatpush2.bf16.msra.mxu0 %v1915
        %2468 = vmatprep.mubr.bf16.mxu0 %v652
        %2469 = vmatmul.mubr.bf16.gmra.mxu0 %v651
        %v2470 = vpop.f32.mrf.mxu0
        %v2471 = vadd.f32 %v2430, %v2470
        %v2472 = vpop.f32.mrf.mxu0
        %v2473 = vadd.f32 %v2432, %v2472
        %v2474 = vpop.f32.mrf.mxu0
        %v2475 = vpop.f32.mrf.mxu0
        %2476 = vdwg.mxu0
        %2477 = vmatprep.subr.bf16.mxu0 %v1782
        %2478 = vmatpush1.bf16.msra.mxu0 %v1781
        %2479 = vmatprep.subr.bf16.mxu0 %v1774
        %2480 = vmatpush1.bf16.msra.mxu0 %v1773
        %2481 = vmatprep.subr.bf16.mxu0 %v1766
        %2482 = vmatpush1.bf16.msra.mxu0 %v1765
        %2483 = vmatprep.subr.bf16.mxu0 %v1758
        %2484 = vmatpush1.bf16.msra.mxu0 %v1757
        %2485 = vmatprep.subr.bf16.mxu0 %v1750
        %2486 = vmatpush1.bf16.msra.mxu0 %v1749
        %2487 = vmatprep.subr.bf16.mxu0 %v1742
        %2488 = vmatpush1.bf16.msra.mxu0 %v1741
        %2489 = vmatprep.subr.bf16.mxu0 %v1734
        %2490 = vmatpush1.bf16.msra.mxu0 %v1733
        %2491 = vmatprep.subr.bf16.mxu0 %v1726
        %2492 = vmatpush1.bf16.msra.mxu0 %v1725
        %2493 = vmatprep.subr.bf16.mxu0 %v1846
        %2494 = vmatpush2.bf16.msra.mxu0 %v1845
        %2495 = vmatprep.subr.bf16.mxu0 %v1838
        %2496 = vmatpush2.bf16.msra.mxu0 %v1837
        %2497 = vmatprep.subr.bf16.mxu0 %v1830
        %2498 = vmatpush2.bf16.msra.mxu0 %v1829
        %2499 = vmatprep.subr.bf16.mxu0 %v1822
        %2500 = vmatpush2.bf16.msra.mxu0 %v1821
        %2501 = vmatprep.subr.bf16.mxu0 %v1814
        %2502 = vmatpush2.bf16.msra.mxu0 %v1813
        %2503 = vmatprep.subr.bf16.mxu0 %v1806
        %2504 = vmatpush2.bf16.msra.mxu0 %v1805
        %2505 = vmatprep.subr.bf16.mxu0 %v1798
        %2506 = vmatpush2.bf16.msra.mxu0 %v1797
        %2507 = vmatprep.subr.bf16.mxu0 %v1790
        %2508 = vmatpush2.bf16.msra.mxu0 %v1789
        %2509 = vmatprep.mubr.bf16.mxu0 %v650
        %2510 = vmatmul.mubr.bf16.gmra.mxu0 %v649
        %v2511 = vpop.f32.mrf.mxu0
        %v2512 = vadd.f32 %v938, %v2511
        %v2513 = vpop.f32.mrf.mxu0
        %v2514 = vadd.f32 %v942, %v2513
        %v2515 = vpop.f32.mrf.mxu0
        %v2516 = vpop.f32.mrf.mxu0
        %2517 = vdwg.mxu0
        %2518 = vmatprep.subr.bf16.mxu0 %v1910
        %2519 = vmatpush1.bf16.msra.mxu0 %v1909
        %2520 = vmatprep.subr.bf16.mxu0 %v1902
        %2521 = vmatpush1.bf16.msra.mxu0 %v1901
        %2522 = vmatprep.subr.bf16.mxu0 %v1894
        %2523 = vmatpush1.bf16.msra.mxu0 %v1893
        %2524 = vmatprep.subr.bf16.mxu0 %v1886
        %2525 = vmatpush1.bf16.msra.mxu0 %v1885
        %2526 = vmatprep.subr.bf16.mxu0 %v1878
        %2527 = vmatpush1.bf16.msra.mxu0 %v1877
        %2528 = vmatprep.subr.bf16.mxu0 %v1870
        %2529 = vmatpush1.bf16.msra.mxu0 %v1869
        %2530 = vmatprep.subr.bf16.mxu0 %v1862
        %2531 = vmatpush1.bf16.msra.mxu0 %v1861
        %2532 = vmatprep.subr.bf16.mxu0 %v1854
        %2533 = vmatpush1.bf16.msra.mxu0 %v1853
        %2534 = vmatprep.subr.bf16.mxu0 %v1974
        %2535 = vmatpush2.bf16.msra.mxu0 %v1973
        %2536 = vmatprep.subr.bf16.mxu0 %v1966
        %2537 = vmatpush2.bf16.msra.mxu0 %v1965
        %2538 = vmatprep.subr.bf16.mxu0 %v1958
        %2539 = vmatpush2.bf16.msra.mxu0 %v1957
        %2540 = vmatprep.subr.bf16.mxu0 %v1950
        %2541 = vmatpush2.bf16.msra.mxu0 %v1949
        %2542 = vmatprep.subr.bf16.mxu0 %v1942
        %2543 = vmatpush2.bf16.msra.mxu0 %v1941
        %2544 = vmatprep.subr.bf16.mxu0 %v1934
        %2545 = vmatpush2.bf16.msra.mxu0 %v1933
        %2546 = vmatprep.subr.bf16.mxu0 %v1926
        %2547 = vmatpush2.bf16.msra.mxu0 %v1925
        %2548 = vmatprep.subr.bf16.mxu0 %v1918
        %2549 = vmatpush2.bf16.msra.mxu0 %v1917
        %2550 = vmatprep.mubr.bf16.mxu0 %v652
        %2551 = vmatmul.mubr.bf16.gmra.mxu0 %v651
        %v2552 = vpop.f32.mrf.mxu0
        %v2553 = vadd.f32 %v2512, %v2552
        %v2554 = vpop.f32.mrf.mxu0
        %v2555 = vadd.f32 %v2514, %v2554
        %v2556 = vpop.f32.mrf.mxu0
        %v2557 = vpop.f32.mrf.mxu0
        %2558 = vdwg.mxu0
        %v2559 = vxor.u32 %v2307, 2147483648
        %v2560 = vxor.u32 %v2309, 2147483648
        %v2561 = vmul.f32 %v2559, 1.442695
        %v2562 = vpow.pop %v2561
        %v2563 = vmul.f32 %v2560, 1.442695
        %v2564 = vpow.pop %v2563
        %v2565 = vadd.f32 %v2562, 1.0
        %v2566 = vadd.f32 %v2564, 1.0
        %v2567 = vrcp.pop %v2565
        %v2568 = vmul.f32 1.0, %v2567
        %v2569 = vrcp.pop %v2566
        %v2570 = vmul.f32 1.0, %v2569
        %v2571 = vxor.u32 %v2389, 2147483648
        %v2572 = vxor.u32 %v2391, 2147483648
        %v2573 = vmul.f32 %v2571, 1.442695
        %v2574 = vpow.pop %v2573
        %v2575 = vmul.f32 %v2572, 1.442695
        %v2576 = vpow.pop %v2575
        %v2577 = vadd.f32 %v2574, 1.0
        %v2578 = vadd.f32 %v2576, 1.0
        %v2579 = vrcp.pop %v2577
        %v2580 = vmul.f32 1.0, %v2579
        %v2581 = vrcp.pop %v2578
        %v2582 = vmul.f32 1.0, %v2581
        %v2583 = vtanh.pop %v2471
        %v2584 = vtanh.pop %v2473
        %v2585 = vxor.u32 %v2553, 2147483648
        %v2586 = vxor.u32 %v2555, 2147483648
        %v2587 = vmul.f32 %v2585, 1.442695
        %v2588 = vpow.pop %v2587
        %v2589 = vmul.f32 %v2586, 1.442695
        %v2590 = vpow.pop %v2589
        %v2591 = vadd.f32 %v2588, 1.0
        %v2592 = vadd.f32 %v2590, 1.0
        %v2593 = vrcp.pop %v2591
        %v2594 = vmul.f32 1.0, %v2593
        %v2595 = vrcp.pop %v2592
        %v2596 = vmul.f32 1.0, %v2595
        %v2598 = vcombine.high %v572, %v572
        %v2600 = vmul.f32 %v2580, %v572
        %v2601 = vmul.f32 %v2582, %v2598
        %v2602 = vmul.f32 %v2568, %v2583
        %v2603 = vmul.f32 %v2570, %v2584
        %v2604 = vadd.f32 %v2600, %v2602
        %v2605 = vadd.f32 %v2601, %v2603
        %v2606 = vtanh.pop %v2604
        %v2607 = vtanh.pop %v2605
        %v2608 = vmul.f32 %v2594, %v2606
        %v2609 = vmul.f32 %v2596, %v2607
        %v2610 = vld [vmem:[%s0] sm:$0xf]
        %v2611 = vstv %s36
        %vm2612 = vcmp.lt.s32.totalorder %v2611, %v2610
        %v2613 = vsel %vm2612, 1, 0
        %2614 = vset.pattern.permute.xlu0 0
        %2615 = vperm.xlu0 %2614, %v2613
        %v2616 = vpop.permute.xlu0 %2615
        %vm2617 = vcmp.eq.s32.totalorder %v2616, 1
        %v2618 = vsel %vm2617, %v2608, %v571
        %v2619 = vsel %vm2617, %v2609, %v647
        %v2620 = vsel %vm2617, %v2604, %v572
        %v2621 = vsel %vm2617, %v2605, %v2598
        %v2624 = vcombine.low %v2618, %v2619
        %2626 = vst [vmem:[#allocation15] sm:$0xff] %v2624
        %v2629 = vcombine.low %v2620, %v2621
        %2631 = vst [vmem:[#allocation17] sm:$0xff] %v2629
        %v2632 = vsel %vm2617, %v2608, 0.0
        %v2633 = vsel %vm2617, %v2609, 0.0
        %v2634 = vpack.c.bf16 %v2632, %v2632
        %v2635 = vpack.c.bf16 %v2633, %v2633
        %v2636 = vld [vmem:[#allocation10] sm:$0xff]
        %v2637 = vld [vmem:[#allocation10 + $0x8] sm:$0xff]
        %v2638 = vld [vmem:[#allocation10 + $0x10] sm:$0xff]
        %v2639 = vld [vmem:[#allocation10 + $0x18] sm:$0xff]
        %v2640 = vld [vmem:[#allocation10 + $0x20] sm:$0xff]
        %v2641 = vld [vmem:[#allocation10 + $0x28] sm:$0xff]
        %v2642 = vld [vmem:[#allocation10 + $0x30] sm:$0xff]
        %v2643 = vld [vmem:[#allocation10 + $0x38] sm:$0xff]
        %v2644 = vld [vmem:[#allocation10 + $0x40] sm:$0xff]
        %v2645 = vld [vmem:[#allocation10 + $0x48] sm:$0xff]
        %v2646 = vld [vmem:[#allocation10 + $0x50] sm:$0xff]
        %v2647 = vld [vmem:[#allocation10 + $0x58] sm:$0xff]
        %v2648 = vld [vmem:[#allocation10 + $0x60] sm:$0xff]
        %v2649 = vld [vmem:[#allocation10 + $0x68] sm:$0xff]
        %v2650 = vld [vmem:[#allocation10 + $0x70] sm:$0xff]
        %v2651 = vld [vmem:[#allocation10 + $0x78] sm:$0xff]
        %v2652 = vld [vmem:[#allocation10 + $0x80] sm:$0xff]
        %v2653 = vld [vmem:[#allocation10 + $0x88] sm:$0xff]
        %v2654 = vld [vmem:[#allocation10 + $0x90] sm:$0xff]
        %v2655 = vld [vmem:[#allocation10 + $0x98] sm:$0xff]
        %v2656 = vld [vmem:[#allocation10 + $0xa0] sm:$0xff]
        %v2657 = vld [vmem:[#allocation10 + $0xa8] sm:$0xff]
        %v2658 = vld [vmem:[#allocation10 + $0xb0] sm:$0xff]
        %v2659 = vld [vmem:[#allocation10 + $0xb8] sm:$0xff]
        %v2660 = vld [vmem:[#allocation10 + $0xc0] sm:$0xff]
        %v2661 = vld [vmem:[#allocation10 + $0xc8] sm:$0xff]
        %v2662 = vld [vmem:[#allocation10 + $0xd0] sm:$0xff]
        %v2663 = vld [vmem:[#allocation10 + $0xd8] sm:$0xff]
        %v2664 = vld [vmem:[#allocation10 + $0xe0] sm:$0xff]
        %v2665 = vld [vmem:[#allocation10 + $0xe8] sm:$0xff]
        %v2666 = vld [vmem:[#allocation10 + $0xf0] sm:$0xff]
        %v2667 = vld [vmem:[#allocation10 + $0xf8] sm:$0xff]
        %v2668 = vld [vmem:[#allocation11] sm:$0x3]
        %v2670 = vlaneseq
        %v2671 = vshrl.u32 %v2670, 7
        %v2672 = vsub.s32 0, %v2671
        %v2673 = vrot.slane %v2668, %v2672
        %v2674 = vlaneseq
        %v2675 = vshrl.u32 %v2674, 7
        %v2676 = vsub.s32 1, %v2675
        %v2677 = vrot.slane %v2668, %v2676
        %v2712 = vunpack.c.l.b16 %v2636
        %v2713 = vunpack.c.h.b16 %v2636
        %v2714 = vunpack.c.l.b16 %v2637
        %v2715 = vunpack.c.h.b16 %v2637
        %v2716 = vunpack.c.l.b16 %v2638
        %v2717 = vunpack.c.h.b16 %v2638
        %v2718 = vunpack.c.l.b16 %v2639
        %v2719 = vunpack.c.h.b16 %v2639
        %v2720 = vunpack.c.l.b16 %v2640
        %v2721 = vunpack.c.h.b16 %v2640
        %v2722 = vunpack.c.l.b16 %v2641
        %v2723 = vunpack.c.h.b16 %v2641
        %v2724 = vunpack.c.l.b16 %v2642
        %v2725 = vunpack.c.h.b16 %v2642
        %v2726 = vunpack.c.l.b16 %v2643
        %v2727 = vunpack.c.h.b16 %v2643
        %v2728 = vunpack.c.l.b16 %v2644
        %v2729 = vunpack.c.h.b16 %v2644
        %v2730 = vunpack.c.l.b16 %v2645
        %v2731 = vunpack.c.h.b16 %v2645
        %v2732 = vunpack.c.l.b16 %v2646
        %v2733 = vunpack.c.h.b16 %v2646
        %v2734 = vunpack.c.l.b16 %v2647
        %v2735 = vunpack.c.h.b16 %v2647
        %v2736 = vunpack.c.l.b16 %v2648
        %v2737 = vunpack.c.h.b16 %v2648
        %v2738 = vunpack.c.l.b16 %v2649
        %v2739 = vunpack.c.h.b16 %v2649
        %v2740 = vunpack.c.l.b16 %v2650
        %v2741 = vunpack.c.h.b16 %v2650
        %v2742 = vunpack.c.l.b16 %v2651
        %v2743 = vunpack.c.h.b16 %v2651
        %v2744 = vunpack.c.l.b16 %v2652
        %v2745 = vunpack.c.h.b16 %v2652
        %v2746 = vunpack.c.l.b16 %v2653
        %v2747 = vunpack.c.h.b16 %v2653
        %v2748 = vunpack.c.l.b16 %v2654
        %v2749 = vunpack.c.h.b16 %v2654
        %v2750 = vunpack.c.l.b16 %v2655
        %v2751 = vunpack.c.h.b16 %v2655
        %v2752 = vunpack.c.l.b16 %v2656
        %v2753 = vunpack.c.h.b16 %v2656
        %v2754 = vunpack.c.l.b16 %v2657
        %v2755 = vunpack.c.h.b16 %v2657
        %v2756 = vunpack.c.l.b16 %v2658
        %v2757 = vunpack.c.h.b16 %v2658
        %v2758 = vunpack.c.l.b16 %v2659
        %v2759 = vunpack.c.h.b16 %v2659
        %v2760 = vunpack.c.l.b16 %v2660
        %v2761 = vunpack.c.h.b16 %v2660
        %v2762 = vunpack.c.l.b16 %v2661
        %v2763 = vunpack.c.h.b16 %v2661
        %v2764 = vunpack.c.l.b16 %v2662
        %v2765 = vunpack.c.h.b16 %v2662
        %v2766 = vunpack.c.l.b16 %v2663
        %v2767 = vunpack.c.h.b16 %v2663
        %v2768 = vunpack.c.l.b16 %v2664
        %v2769 = vunpack.c.h.b16 %v2664
        %v2770 = vunpack.c.l.b16 %v2665
        %v2771 = vunpack.c.h.b16 %v2665
        %v2772 = vunpack.c.l.b16 %v2666
        %v2773 = vunpack.c.h.b16 %v2666
        %v2774 = vunpack.c.l.b16 %v2667
        %v2775 = vunpack.c.h.b16 %v2667
        %v2776 = vpack.c.b16 %v2714, %v2712
        %v2777 = vpack.c.b16 %v2715, %v2713
        %v2778 = vpack.c.b16 %v2718, %v2716
        %v2779 = vpack.c.b16 %v2719, %v2717
        %v2780 = vpack.c.b16 %v2722, %v2720
        %v2781 = vpack.c.b16 %v2723, %v2721
        %v2782 = vpack.c.b16 %v2726, %v2724
        %v2783 = vpack.c.b16 %v2727, %v2725
        %v2784 = vpack.c.b16 %v2730, %v2728
        %v2785 = vpack.c.b16 %v2731, %v2729
        %v2786 = vpack.c.b16 %v2734, %v2732
        %v2787 = vpack.c.b16 %v2735, %v2733
        %v2788 = vpack.c.b16 %v2738, %v2736
        %v2789 = vpack.c.b16 %v2739, %v2737
        %v2790 = vpack.c.b16 %v2742, %v2740
        %v2791 = vpack.c.b16 %v2743, %v2741
        %v2792 = vpack.c.b16 %v2746, %v2744
        %v2793 = vpack.c.b16 %v2747, %v2745
        %v2794 = vpack.c.b16 %v2750, %v2748
        %v2795 = vpack.c.b16 %v2751, %v2749
        %v2796 = vpack.c.b16 %v2754, %v2752
        %v2797 = vpack.c.b16 %v2755, %v2753
        %v2798 = vpack.c.b16 %v2758, %v2756
        %v2799 = vpack.c.b16 %v2759, %v2757
        %v2800 = vpack.c.b16 %v2762, %v2760
        %v2801 = vpack.c.b16 %v2763, %v2761
        %v2802 = vpack.c.b16 %v2766, %v2764
        %v2803 = vpack.c.b16 %v2767, %v2765
        %v2804 = vpack.c.b16 %v2770, %v2768
        %v2805 = vpack.c.b16 %v2771, %v2769
        %v2806 = vpack.c.b16 %v2774, %v2772
        %v2807 = vpack.c.b16 %v2775, %v2773
        %2840 = vmatprep.subr.bf16.mxu0 %v2791
        %2841 = vmatpush1.bf16.msra.mxu0 %v2790
        %2842 = vmatprep.subr.bf16.mxu0 %v2789
        %2843 = vmatpush1.bf16.msra.mxu0 %v2788
        %2844 = vmatprep.subr.bf16.mxu0 %v2787
        %2845 = vmatpush1.bf16.msra.mxu0 %v2786
        %2846 = vmatprep.subr.bf16.mxu0 %v2785
        %2847 = vmatpush1.bf16.msra.mxu0 %v2784
        %2848 = vmatprep.subr.bf16.mxu0 %v2783
        %2849 = vmatpush1.bf16.msra.mxu0 %v2782
        %2850 = vmatprep.subr.bf16.mxu0 %v2781
        %2851 = vmatpush1.bf16.msra.mxu0 %v2780
        %2852 = vmatprep.subr.bf16.mxu0 %v2779
        %2853 = vmatpush1.bf16.msra.mxu0 %v2778
        %2854 = vmatprep.subr.bf16.mxu0 %v2777
        %2855 = vmatpush1.bf16.msra.mxu0 %v2776
        %2856 = vmatprep.subr.bf16.mxu0 %v2807
        %2857 = vmatpush2.bf16.msra.mxu0 %v2806
        %2858 = vmatprep.subr.bf16.mxu0 %v2805
        %2859 = vmatpush2.bf16.msra.mxu0 %v2804
        %2860 = vmatprep.subr.bf16.mxu0 %v2803
        %2861 = vmatpush2.bf16.msra.mxu0 %v2802
        %2862 = vmatprep.subr.bf16.mxu0 %v2801
        %2863 = vmatpush2.bf16.msra.mxu0 %v2800
        %2864 = vmatprep.subr.bf16.mxu0 %v2799
        %2865 = vmatpush2.bf16.msra.mxu0 %v2798
        %2866 = vmatprep.subr.bf16.mxu0 %v2797
        %2867 = vmatpush2.bf16.msra.mxu0 %v2796
        %2868 = vmatprep.subr.bf16.mxu0 %v2795
        %2869 = vmatpush2.bf16.msra.mxu0 %v2794
        %2870 = vmatprep.subr.bf16.mxu0 %v2793
        %2871 = vmatpush2.bf16.msra.mxu0 %v2792
        %2872 = vmatprep.mubr.bf16.mxu0 %v2635
        %2873 = vmatmul.mubr.bf16.gmra.mxu0 %v2634
        %v2874 = vpop.f32.mrf.mxu0
        %v2875 = vadd.f32 %v2673, %v2874
        %v2876 = vpop.f32.mrf.mxu0
        %v2877 = vadd.f32 %v2677, %v2876
        %v2878 = vpop.f32.mrf.mxu0
        %v2879 = vpop.f32.mrf.mxu0
        %2880 = vdwg.mxu0
        %v2881 = vmax.f32 %v2875, 0.0
        %v2882 = vmax.f32 %v2877, 0.0
        %v2883 = vpack.c.bf16 %v2881, %v2881
        %v2884 = vpack.c.bf16 %v2882, %v2882
        %v2885 = vld [vmem:[#allocation13] sm:$0xf]
        %v2886 = vld [vmem:[#allocation13 + $0x4] sm:$0xf]
        %v2887 = vld [vmem:[#allocation13 + $0x8] sm:$0xf]
        %v2888 = vld [vmem:[#allocation13 + $0xc] sm:$0xf]
        %v2889 = vld [vmem:[#allocation13 + $0x10] sm:$0xf]
        %v2890 = vld [vmem:[#allocation13 + $0x14] sm:$0xf]
        %v2891 = vld [vmem:[#allocation13 + $0x18] sm:$0xf]
        %v2892 = vld [vmem:[#allocation13 + $0x1c] sm:$0xf]
        %v2893 = vld [vmem:[#allocation13 + $0x20] sm:$0xf]
        %v2894 = vld [vmem:[#allocation13 + $0x24] sm:$0xf]
        %v2895 = vld [vmem:[#allocation13 + $0x28] sm:$0xf]
        %v2896 = vld [vmem:[#allocation13 + $0x2c] sm:$0xf]
        %v2897 = vld [vmem:[#allocation13 + $0x30] sm:$0xf]
        %v2898 = vld [vmem:[#allocation13 + $0x34] sm:$0xf]
        %v2899 = vld [vmem:[#allocation13 + $0x38] sm:$0xf]
        %v2900 = vld [vmem:[#allocation13 + $0x3c] sm:$0xf]
        %v2901 = vld [vmem:[#allocation13 + $0x40] sm:$0xf]
        %v2902 = vld [vmem:[#allocation13 + $0x44] sm:$0xf]
        %v2903 = vld [vmem:[#allocation13 + $0x48] sm:$0xf]
        %v2904 = vld [vmem:[#allocation13 + $0x4c] sm:$0xf]
        %v2905 = vld [vmem:[#allocation13 + $0x50] sm:$0xf]
        %v2906 = vld [vmem:[#allocation13 + $0x54] sm:$0xf]
        %v2907 = vld [vmem:[#allocation13 + $0x58] sm:$0xf]
        %v2908 = vld [vmem:[#allocation13 + $0x5c] sm:$0xf]
        %v2909 = vld [vmem:[#allocation13 + $0x60] sm:$0xf]
        %v2910 = vld [vmem:[#allocation13 + $0x64] sm:$0xf]
        %v2911 = vld [vmem:[#allocation13 + $0x68] sm:$0xf]
        %v2912 = vld [vmem:[#allocation13 + $0x6c] sm:$0xf]
        %v2913 = vld [vmem:[#allocation13 + $0x70] sm:$0xf]
        %v2914 = vld [vmem:[#allocation13 + $0x74] sm:$0xf]
        %v2915 = vld [vmem:[#allocation13 + $0x78] sm:$0xf]
        %v2916 = vld [vmem:[#allocation13 + $0x7c] sm:$0xf]
        %v2917 = vld [vmem:[%s9] sm:$0x1]
        %v2919 = vlaneseq
        %v2920 = vshrl.u32 %v2919, 7
        %v2921 = vsub.s32 0, %v2920
        %v2922 = vrot.slane %v2917, %v2921
        %v2956 = vunpack.c.l.b16 %v2885
        %v2957 = vunpack.c.l.b16 %v2886
        %v2958 = vunpack.c.l.b16 %v2887
        %v2959 = vunpack.c.l.b16 %v2888
        %v2960 = vunpack.c.l.b16 %v2889
        %v2961 = vunpack.c.l.b16 %v2890
        %v2962 = vunpack.c.l.b16 %v2891
        %v2963 = vunpack.c.l.b16 %v2892
        %v2964 = vunpack.c.l.b16 %v2893
        %v2965 = vunpack.c.l.b16 %v2894
        %v2966 = vunpack.c.l.b16 %v2895
        %v2967 = vunpack.c.l.b16 %v2896
        %v2968 = vunpack.c.l.b16 %v2897
        %v2969 = vunpack.c.l.b16 %v2898
        %v2970 = vunpack.c.l.b16 %v2899
        %v2971 = vunpack.c.l.b16 %v2900
        %v2972 = vunpack.c.l.b16 %v2901
        %v2973 = vunpack.c.l.b16 %v2902
        %v2974 = vunpack.c.l.b16 %v2903
        %v2975 = vunpack.c.l.b16 %v2904
        %v2976 = vunpack.c.l.b16 %v2905
        %v2977 = vunpack.c.l.b16 %v2906
        %v2978 = vunpack.c.l.b16 %v2907
        %v2979 = vunpack.c.l.b16 %v2908
        %v2980 = vunpack.c.l.b16 %v2909
        %v2981 = vunpack.c.l.b16 %v2910
        %v2982 = vunpack.c.l.b16 %v2911
        %v2983 = vunpack.c.l.b16 %v2912
        %v2984 = vunpack.c.l.b16 %v2913
        %v2985 = vunpack.c.l.b16 %v2914
        %v2986 = vunpack.c.l.b16 %v2915
        %v2987 = vunpack.c.l.b16 %v2916
        %v2988 = vpack.c.b16 %v2957, %v2956
        %v2989 = vpack.c.b16 %v2959, %v2958
        %v2990 = vpack.c.b16 %v2961, %v2960
        %v2991 = vpack.c.b16 %v2963, %v2962
        %v2992 = vpack.c.b16 %v2965, %v2964
        %v2993 = vpack.c.b16 %v2967, %v2966
        %v2994 = vpack.c.b16 %v2969, %v2968
        %v2995 = vpack.c.b16 %v2971, %v2970
        %v2996 = vpack.c.b16 %v2973, %v2972
        %v2997 = vpack.c.b16 %v2975, %v2974
        %v2998 = vpack.c.b16 %v2977, %v2976
        %v2999 = vpack.c.b16 %v2979, %v2978
        %v3000 = vpack.c.b16 %v2981, %v2980
        %v3001 = vpack.c.b16 %v2983, %v2982
        %v3002 = vpack.c.b16 %v2985, %v2984
        %v3003 = vpack.c.b16 %v2987, %v2986
        %3020 = vmatprep.subr.bf16.mxu0 0
        %3021 = vmatpush1.bf16.msra.mxu0 %v2995
        %3022 = vmatprep.subr.bf16.mxu0 0
        %3023 = vmatpush1.bf16.msra.mxu0 %v2994
        %3024 = vmatprep.subr.bf16.mxu0 0
        %3025 = vmatpush1.bf16.msra.mxu0 %v2993
        %3026 = vmatprep.subr.bf16.mxu0 0
        %3027 = vmatpush1.bf16.msra.mxu0 %v2992
        %3028 = vmatprep.subr.bf16.mxu0 0
        %3029 = vmatpush1.bf16.msra.mxu0 %v2991
        %3030 = vmatprep.subr.bf16.mxu0 0
        %3031 = vmatpush1.bf16.msra.mxu0 %v2990
        %3032 = vmatprep.subr.bf16.mxu0 0
        %3033 = vmatpush1.bf16.msra.mxu0 %v2989
        %3034 = vmatprep.subr.bf16.mxu0 0
        %3035 = vmatpush1.bf16.msra.mxu0 %v2988
        %3036 = vmatprep.subr.bf16.mxu0 0
        %3037 = vmatpush2.bf16.msra.mxu0 %v3003
        %3038 = vmatprep.subr.bf16.mxu0 0
        %3039 = vmatpush2.bf16.msra.mxu0 %v3002
        %3040 = vmatprep.subr.bf16.mxu0 0
        %3041 = vmatpush2.bf16.msra.mxu0 %v3001
        %3042 = vmatprep.subr.bf16.mxu0 0
        %3043 = vmatpush2.bf16.msra.mxu0 %v3000
        %3044 = vmatprep.subr.bf16.mxu0 0
        %3045 = vmatpush2.bf16.msra.mxu0 %v2999
        %3046 = vmatprep.subr.bf16.mxu0 0
        %3047 = vmatpush2.bf16.msra.mxu0 %v2998
        %3048 = vmatprep.subr.bf16.mxu0 0
        %3049 = vmatpush2.bf16.msra.mxu0 %v2997
        %3050 = vmatprep.subr.bf16.mxu0 0
        %3051 = vmatpush2.bf16.msra.mxu0 %v2996
        %3052 = vmatprep.mubr.bf16.mxu0 %v2884
        %3053 = vmatmul.mubr.bf16.gmra.mxu0 %v2883
        %v3054 = vpop.f32.mrf.mxu0
        %v3055 = vadd.f32 %v2922, %v3054
        %v3056 = vpop.f32.mrf.mxu0
        %v3057 = vpop.f32.mrf.mxu0
        %v3058 = vpop.f32.mrf.mxu0
        %3059 = vdwg.mxu0
        %vm3060 = vcmask 1043456
        %v3061 = vsel %vm3060, %v3055, -inf
        %3062 = vmax.xlane.f32.xlu0 %v3061
        %v3063 = vpop.xlane.xlu0 %3062
        %v3064 = vsub.f32 %v3055, %v3063
        %v3065 = vmul.f32 %v3064, 1.442695
        %v3066 = vpow.pop %v3065
        %v3067 = vsel %vm3060, %v3066, 0.0
        %3068 = vadd.xlane.f32.xlu0 %v3067
        %v3069 = vpop.xlane.xlu0 %3068
        %v3070 = vrcp.pop %v3069
        %v3071 = vmul.f32 %v3066, %v3070
        %3072 = vst [vmem:[%s557] sm:$0xf] %v3071
        %s3073 = sand.u32 %s301, 1
        %s3074 = scalar_lea.sflag [#allocation4], %s3073
        %s3075 = sand.u32 %s301, 1
        %s3076 = smul.addr %s3075, 4
        %s3077 = scalar_lea.vmem [#allocation14], %s3076
        // Predicated region
        $region101: #{tpu_custom_call.1} parent=67 // pred_check
          %p3078 = pneg %p311
        $region102: #{tpu_custom_call.1} parent=67 // pred_check_branch
          %3080 = sbr.rel (%p3078) target = $region104
        $region103: #{tpu_custom_call.1} parent=67 // pred_region
          %s3082 = ssub.s32 64, 64
          %3083 = vsyncadd %s3074, %s3082
          %s3084 = smul.addr %s36, 64
          %s3085 = scalar_lea.hbm %s12, %s3084
          %s3087 = sshll.u32 %s3077, 4
          %s3088 = int_to_ptr.vmem [resolvable:$true] %s3087
          %3090 = dma.vmem_to_hbm [thread:$0]  %s3088, 64, %s3085, %s3074
        $region104: #{tpu_custom_call.1} parent=67 // pred_fallthru
          _
        // Predicated region
        $region105: #{tpu_custom_call.1} parent=67 // pred_check
          %p3091 = pneg %p332
        $region106: #{tpu_custom_call.1} parent=67 // pred_check_branch
          %3093 = sbr.rel (%p3091) target = $region108
        $region107: #{tpu_custom_call.1} parent=67 // pred_region
          %s3095 = ssub.s32 128, 128
          %3096 = vsyncadd [#allocation16], %s3095
          %s3098 = sshll.u32 [#allocation15], 4
          %s3099 = int_to_ptr.vmem [resolvable:$true] %s3098
          %3101 = dma.vmem_to_hbm [thread:$0]  %s3099, 128, %s13, [#allocation16]
        $region108: #{tpu_custom_call.1} parent=67 // pred_fallthru
          _
        // Predicated region
        $region109: #{tpu_custom_call.1} parent=67 // pred_check
          %p3102 = pneg %p353
        $region110: #{tpu_custom_call.1} parent=67 // pred_check_branch
          %3104 = sbr.rel (%p3102) target = $region112
        $region111: #{tpu_custom_call.1} parent=67 // pred_region
          %s3106 = ssub.s32 128, 128
          %3107 = vsyncadd [#allocation16], %s3106
          %s3109 = sshll.u32 [#allocation17], 4
          %s3110 = int_to_ptr.vmem [resolvable:$true] %s3109
          %3112 = dma.vmem_to_hbm [thread:$0]  %s3110, 128, %s14, [#allocation16]
        $region112: #{tpu_custom_call.1} parent=67 // pred_fallthru
          _
        // Predicated region
        $region113: #{tpu_custom_call.1} parent=67 // pred_check
          %p3113 = pneg %p332
        $region114: #{tpu_custom_call.1} parent=67 // pred_check_branch
          %3115 = sbr.rel (%p3113) target = $region116
        $region115: #{tpu_custom_call.1} parent=67 // pred_region
          %3116 = dma.done [#allocation16], 128
        $region116: #{tpu_custom_call.1} parent=67 // pred_fallthru
          _
        // Predicated region
        $region117: #{tpu_custom_call.1} parent=67 // pred_check
          %p3117 = pneg %p353
        $region118: #{tpu_custom_call.1} parent=67 // pred_check_branch
          %3119 = sbr.rel (%p3117) target = $region120
        $region119: #{tpu_custom_call.1} parent=67 // pred_region
          %3120 = dma.done [#allocation16], 128
        $region120: #{tpu_custom_call.1} parent=67 // pred_fallthru
          _
      $region68: #{tpu_custom_call.1} parent=5 // pred_fallthru
        _
      %p3121 = scmp.le.s32.totalorder 2, %s31
      // Predicated region
      $region121: #{tpu_custom_call.1} parent=5 // pred_check
        %p3122 = pneg %p3121
      $region122: #{tpu_custom_call.1} parent=5 // pred_check_branch
        %3124 = sbr.rel (%p3122) target = $region124
      $region123: #{tpu_custom_call.1} parent=5 // pred_region
        %s3125 = ssub.s32 %s31, 2
        // Predicated region
        $region125: #{tpu_custom_call.1} parent=123 // pred_check
          %p3126 = pneg %p317
        $region126: #{tpu_custom_call.1} parent=123 // pred_check_branch
          %3128 = sbr.rel (%p3126) target = $region128
        $region127: #{tpu_custom_call.1} parent=123 // pred_region
          %s3129 = sand.u32 %s302, 1
          %s3130 = scalar_lea.sflag [#allocation4], %s3129
          %s3131 = sand.u32 %s302, 1
          %s3132 = smul.addr %s3131, 4
          %s3133 = scalar_lea.vmem [#allocation14], %s3132
          %3134 = dma.done %s3130, 64
        $region128: #{tpu_custom_call.1} parent=123 // pred_fallthru
          _
      $region124: #{tpu_custom_call.1} parent=5 // pred_fallthru
        _
    $region6: #{tpu_custom_call.1} parent=1 // loop_footer
      %s35 = sadd.s32 1, %s31
    $region7: #{tpu_custom_call.1} parent=1 // loop_footer_branch
      %30 = sbr.rel target = $region3
    $region8: #{tpu_custom_call.1} parent=1 // loop_exit
      _
    %3135 = vsyncpa [#allocation3], 1
    %s3136 = scalar_lea.sflag [#allocation3], 1
    %3137 = vsyncpa %s3136, 1
    %3138 = vsyncpa [#allocation6], 1
    %3139 = vsyncpa [#allocation9], 1
    %3140 = vsyncpa [#allocation12], 1
    %3141 = vsyncpa [#allocation4], 1
    %s3142 = scalar_lea.sflag [#allocation4], 1
    %3143 = vsyncpa %s3142, 1
    %3144 = vsyncpa [#allocation16], 1

</llo_original>
